<compile_context>
chip_gen: v7x
topology: tpu7x:2x2x1
jax: 0.10.0
libtpu: 0.0.40
codegen_flags: <defaults>
</compile_context>

<pallas_src>
import functools

import jax
import jax.numpy as jnp
from jax import lax
from jax.experimental import pallas as pl
from jax.experimental.pallas import tpu as pltpu

EPS = 1e-5
_INV_SQRT2 = 0.7071067811865476
_MXU_MIN_K = 16          # contraction size at which the 1x1 convs move to the MXU


# --------------------------------------------------------------------------- #
# In-kernel math helpers
# --------------------------------------------------------------------------- #
def _recip(x):
    # EUP approximate reciprocal + one Newton-Raphson step (~f32 accuracy) --
    # keeps divides off the VALU slots that carry the GELU polynomial.
    # Callers guarantee x is finite and >= 1, so inf*0 can never appear.
    r = pl.reciprocal(x, approx=True)
    return r * (2.0 - x * r)


def _erf(x):
    # Abramowitz & Stegun 7.1.26 rational approximation, |err| < 1.5e-7
    # -> matches PyTorch's exact erf-GELU at float32 precision.
    a1, a2, a3, a4, a5 = 0.254829592, -0.284496736, 1.421413741, -1.453152027, 1.061405429
    p = 0.3275911
    sgn = jnp.where(x < 0.0, -1.0, 1.0)
    ax = jnp.abs(x)
    t = _recip(1.0 + p * ax)                 # denominator >= 1: safe
    poly = ((((a5 * t + a4) * t + a3) * t + a2) * t + a1) * t
    return sgn * (1.0 - poly * jnp.exp(-ax * ax))


def _gelu_exact(x):
    # TODO(synk): on v6e/v7x the polynomial interior could run in bf16 (packed
    #             VALU); kept f32 for v5e compatibility and accuracy headroom.
    return 0.5 * x * (1.0 + _erf(x * _INV_SQRT2))


def _sigmoid(a):
    # Numerically stable: exp(-|a|) <= 1, so the reciprocal denominator is in
    # [1, 2] and the Newton-refined approx reciprocal can never produce NaN.
    t = jnp.exp(-jnp.abs(a))
    r = _recip(1.0 + t)
    return jnp.where(a >= 0.0, r, t * r)


def _small_matmul(w, x, b):
    # (R, K) @ (K, P) + (R, 1).
    # Tiny contractions (K = 2..8 at the tested widths) stay as unrolled VPU
    # FMAs on lane-dense operands -- an MXU pass would be almost all fill/drain.
    # Once K is large enough to fill the MXU usefully, dispatch to jnp.dot so
    # the contraction moves off the (binding) VALU slots onto the idle MXU.
    _, k_dim = w.shape
    if k_dim >= _MXU_MIN_K and x.shape[-1] % 128 == 0:
        return jnp.dot(w, x, preferred_element_type=jnp.float32) + b
    acc = w[:, 0:1] * x[0:1, :]
    for k in range(1, k_dim):
        acc = acc + w[:, k:k + 1] * x[k:k + 1, :]
    return acc + b


def _batchnorm(x, gamma, beta, inv_p):
    # Training-mode BatchNorm with batch statistics.  Two-pass biased variance
    # var = E[(x - mu)^2] -- immune to the cancellation of E[x^2] - mu^2 when
    # |mu| >> sigma.  Both passes are pure lane reductions (channels on sublanes).
    mu = jnp.sum(x, axis=1, keepdims=True) * inv_p
    centered = x - mu
    var = jnp.sum(centered * centered, axis=1, keepdims=True) * inv_p
    return centered * lax.rsqrt(var + EPS) * gamma + beta


# --------------------------------------------------------------------------- #
# Kernel
# --------------------------------------------------------------------------- #
def _mamba_kernel(x_ref, mask_ref,
                  bn1_g, bn1_b,
                  w_in, b_in,
                  w_dw, b_dw,
                  w_a1, b_a1, w_a2, b_a2,
                  bn2_g, bn2_b,
                  w_out, b_out,
                  o_ref,
                  *, n, h, w):
    hw = h * w
    p_dim = n * hw
    inner = w_dw.shape[0]
    inv_p = 1.0 / p_dim

    # ---- assemble the lane-dense (C, N*H*W) working layout in VMEM ----
    # x_ref is the free (N, C, H*W) reshape of the NCHW input; the relayout to
    # pixels-on-lanes happens here as an on-chip lane concatenation instead of
    # an HBM transpose pass in the wrapper.
    x = jnp.concatenate([x_ref[i] for i in range(n)], axis=1)     # (C, P)

    # ---- BatchNorm2d #1 (batch stats, two-pass biased variance) ----
    y = _batchnorm(x, bn1_g[...], bn1_b[...], inv_p)

    # ---- proj_in 1x1 conv: fused (2*inner, C) weight, then chunk ----
    z = _small_matmul(w_in[...], y, b_in[...])                    # (2*inner, P)
    z1 = z[:inner, :]
    z2 = z[inner:, :]

    # ---- depthwise 3x3 conv (padding=1): 8 lane rolls + factored masks ----
    # Column validity is pre-multiplied into the dx=-1 / dx=+1 source operands
    # (shared across all three dy taps); row validity is applied once per dy
    # group: 4 mask multiplies total instead of one per shifted tap.
    masks = mask_ref[...]                                         # (4 + n, P)
    keep_l = masks[0:1, :]      # zero where col == w-1  (sources of dx = -1)
    keep_r = masks[1:2, :]      # zero where col == 0    (sources of dx = +1)
    row_top = masks[2:3, :]     # zero where row == 0    (outputs of dy = -1)
    row_bot = masks[3:4, :]     # zero where row == h-1  (outputs of dy = +1)
    wdw = w_dw[...]                                               # (inner, 9)
    srcs = {-1: z1 * keep_l, 0: z1, 1: z1 * keep_r}

    def dy_group(dy):
        g = None
        for dx in (-1, 0, 1):
            k = (dy + 1) * 3 + (dx + 1)
            d = dy * w + dx
            src = srcs[dx]
            shifted = src if d == 0 else pltpu.roll(src, shift=(-d) % p_dim, axis=1)
            term = shifted * wdw[:, k:k + 1]
            g = term if g is None else g + term
        return g

    acc = dy_group(0)
    acc = acc + dy_group(-1) * row_top
    acc = acc + dy_group(1) * row_bot
    acc = acc + b_dw[...]                                         # (inner, P)

    # ---- GELU (exact / erf) ----
    g1 = _gelu_exact(acc)

    # ---- channel attention: per-image GAP -> 1x1 -> ReLU -> 1x1 -> sigmoid ----
    inv_hw = 1.0 / hw
    pooled = jnp.concatenate(
        [jnp.sum(g1[:, i * hw:(i + 1) * hw], axis=1, keepdims=True) * inv_hw
         for i in range(n)], axis=1)                              # (inner, n)
    a = _small_matmul(w_a1[...], pooled, b_a1[...])               # (inner//4, n)
    a = jnp.maximum(a, 0.0)
    a = _small_matmul(w_a2[...], a, b_a2[...])                    # (inner, n)
    attn = _sigmoid(a)                                            # (inner, n)
    # Broadcast each image's per-channel gain over its lanes with 0/1 lane
    # indicators: n broadcast FMAs, no fresh (inner, P) concat buffer.
    scale = attn[:, 0:1] * masks[4:5, :]
    for i in range(1, n):
        scale = scale + attn[:, i:i + 1] * masks[4 + i:5 + i, :]
    x1 = g1 * scale                                               # (inner, P)

    # ---- BatchNorm2d #2 (batch stats) ----
    x1n = _batchnorm(x1, bn2_g[...], bn2_b[...], inv_p)

    # ---- gate with GELU(x2), 1x1 proj_out, residual (dropout p=0 == identity) ----
    gated = x1n * _gelu_exact(z2)
    out = _small_matmul(w_out[...], gated, b_out[...]) + x        # (C, P)

    # Split back into per-image (C, H*W) slabs -- lane slices at multiples of
    # 128, so the output stores stay unmasked and lane-dense.
    for i in range(n):
        o_ref[i] = out[:, i * hw:(i + 1) * hw]


# --------------------------------------------------------------------------- #
# Host-side wrapper
# --------------------------------------------------------------------------- #
def _conv_masks(n, h, w):
    # Factored 3x3 depthwise-conv validity masks plus per-image lane indicators,
    # all shape (4 + n, n*h*w).  Purely shape-dependent; built once.
    hw = h * w
    row = jnp.repeat(jnp.arange(h), w)                   # (hw,)
    col = jnp.tile(jnp.arange(w), h)                     # (hw,)
    keep_l = jnp.tile(col != w - 1, n)                   # dx = -1 source validity
    keep_r = jnp.tile(col != 0, n)                       # dx = +1 source validity
    row_top = jnp.tile(row != 0, n)                      # dy = -1 output validity
    row_bot = jnp.tile(row != h - 1, n)                  # dy = +1 output validity
    img = jnp.repeat(jnp.arange(n), hw)                  # (n*hw,)
    blk = jnp.stack([img == i for i in range(n)], axis=0)
    base = jnp.stack([keep_l, keep_r, row_top, row_bot], axis=0)
    return jnp.concatenate([base, blk], axis=0).astype(jnp.float32)


def simple_mamba_unit(x_nchw, params):
    n, c, h, w = x_nchw.shape
    hw = h * w
    p_dim = n * hw
    inner = params["w_dw"].shape[0]

    # Free, contiguous reshapes only -- no HBM relayout before or after the call.
    x3 = x_nchw.reshape(n, c, hw)
    masks = _conv_masks(n, h, w)

    args = [x3, masks,
            params["bn1_g"], params["bn1_b"],
            params["w_in"], params["b_in"],
            params["w_dw"], params["b_dw"],
            params["w_a1"], params["b_a1"], params["w_a2"], params["b_a2"],
            params["bn2_g"], params["bn2_b"],
            params["w_out"], params["b_out"]]

    flops = int(2 * p_dim * (c * 2 * inner + 9 * inner + inner * c) + 70 * p_dim * inner)
    bytes_accessed = int(4 * (sum(int(a.size) for a in args) + c * p_dim))
    cost = pl.CostEstimate(flops=flops,
                           transcendentals=int(3 * inner * p_dim),
                           bytes_accessed=bytes_accessed)

    kernel = functools.partial(_mamba_kernel, n=n, h=h, w=w)
    # Gridless single program: the whole working set is < 1 MiB of VMEM and
    # BatchNorm needs global batch statistics (see TODO at top for how this
    # would be gridded at production sizes / for v7x megacore).
    out3 = pl.pallas_call(
        kernel,
        out_shape=jax.ShapeDtypeStruct((n, c, hw), jnp.float32),
        in_specs=[pl.BlockSpec(memory_space=pltpu.MemorySpace.VMEM)] * len(args),
        out_specs=pl.BlockSpec(memory_space=pltpu.MemorySpace.VMEM),
        compiler_params=pltpu.CompilerParams(vmem_limit_bytes=4 * 1024 * 1024),
        cost_estimate=cost,
    )(*args)

    return out3.reshape(n, c, h, w)


# --------------------------------------------------------------------------- #
# Parameters (kernel-friendly orientation: weights (out, in), biases (out, 1))
# --------------------------------------------------------------------------- #
def init_params(key, c, expansion=2):
    inner = c * expansion
    ks = jax.random.split(key, 14)

    def rnd(k, shape, s=0.2):
        return (s * jax.random.normal(k, shape)).astype(jnp.float32)

    return {
        "bn1_g": 1.0 + rnd(ks[0], (c, 1), 0.1), "bn1_b": rnd(ks[1], (c, 1), 0.1),
        # proj_in Conv2d(c, 2*inner, 1): fused (2*inner, c) matmul weight
        "w_in": rnd(ks[2], (2 * inner, c)), "b_in": rnd(ks[3], (2 * inner, 1), 0.05),
        # depthwise Conv2d(inner, inner, 3, groups=inner): (inner, 9) taps
        "w_dw": rnd(ks[4], (inner, 9)), "b_dw": rnd(ks[5], (inner, 1), 0.05),
        "w_a1": rnd(ks[6], (inner // 4, inner)), "b_a1": rnd(ks[7], (inner // 4, 1), 0.05),
        "w_a2": rnd(ks[8], (inner, inner // 4)), "b_a2": rnd(ks[9], (inner, 1), 0.05),
        "bn2_g": 1.0 + rnd(ks[10], (inner, 1), 0.1), "bn2_b": rnd(ks[11], (inner, 1), 0.1),
        "w_out": rnd(ks[12], (c, inner)), "b_out": rnd(ks[13], (c, 1), 0.05),
    }


# --------------------------------------------------------------------------- #
# Pure-JAX reference (exact erf GELU, two-pass BN, highest-precision matmuls)
# --------------------------------------------------------------------------- #
def reference(x_nchw, p):
    n, c, h, w = x_nchw.shape
    inner = p["w_dw"].shape[0]
    hw = h * w

    def mm(a, b):
        return jnp.dot(a, b, precision=lax.Precision.HIGHEST)

    x = jnp.transpose(x_nchw, (1, 0, 2, 3)).reshape(c, -1)            # (c, P)
    mu = x.mean(axis=1, keepdims=True)
    var = ((x - mu) ** 2).mean(axis=1, keepdims=True)
    y = (x - mu) / jnp.sqrt(var + EPS) * p["bn1_g"] + p["bn1_b"]

    z = mm(p["w_in"], y) + p["b_in"]
    z1, z2 = z[:inner], z[inner:]

    z1_img = z1.reshape(inner, n, h, w)
    zp = jnp.pad(z1_img, ((0, 0), (0, 0), (1, 1), (1, 1)))
    conv = sum(zp[:, :, dy:dy + h, dx:dx + w]
               * p["w_dw"][:, dy * 3 + dx][:, None, None, None]
               for dy in range(3) for dx in range(3))
    conv = conv.reshape(inner, -1) + p["b_dw"]

    g1 = jax.nn.gelu(conv, approximate=False)
    pooled = g1.reshape(inner, n, hw).mean(axis=2)                    # (inner, n)
    a = jax.nn.relu(mm(p["w_a1"], pooled) + p["b_a1"])
    attn = jax.nn.sigmoid(mm(p["w_a2"], a) + p["b_a2"])               # (inner, n)
    x1 = (g1.reshape(inner, n, hw) * attn[:, :, None]).reshape(inner, -1)

    mu2 = x1.mean(axis=1, keepdims=True)
    var2 = ((x1 - mu2) ** 2).mean(axis=1, keepdims=True)
    x1n = (x1 - mu2) / jnp.sqrt(var2 + EPS) * p["bn2_g"] + p["bn2_b"]

    gated = x1n * jax.nn.gelu(z2, approximate=False)
    out = mm(p["w_out"], gated) + p["b_out"]
    return jnp.transpose((out + x).reshape(c, n, h, w), (1, 0, 2, 3))


if __name__ == "__main__":
    N, C, H, W = 2, 4, 16, 16              # PyTorch input shape (NCHW)
    key = jax.random.PRNGKey(0)
    kx, kp = jax.random.split(key)
    x_nchw = jax.random.normal(kx, (N, C, H, W), dtype=jnp.float32)

    params = init_params(kp, C, expansion=2)

    out = simple_mamba_unit(x_nchw, params)
    out = jax.block_until_ready(out)

    ref = reference(x_nchw, params)
    max_diff = float(jnp.max(jnp.abs(out - ref)))
    assert max_diff < 5e-3, f"kernel/reference mismatch: {max_diff}"

    print("KERNEL_OK")
</pallas_src>

<mosaic_0001>
module attributes {stable_mosaic.version = 11 : i64} {
  func.func @_mamba_kernel(%arg0: memref<2x4x256xf32, #tpu.memory_space<vmem>>, %arg1: memref<6x512xf32, #tpu.memory_space<vmem>>, %arg2: memref<4x1xf32, #tpu.memory_space<vmem>>, %arg3: memref<4x1xf32, #tpu.memory_space<vmem>>, %arg4: memref<16x4xf32, #tpu.memory_space<vmem>>, %arg5: memref<16x1xf32, #tpu.memory_space<vmem>>, %arg6: memref<8x9xf32, #tpu.memory_space<vmem>>, %arg7: memref<8x1xf32, #tpu.memory_space<vmem>>, %arg8: memref<2x8xf32, #tpu.memory_space<vmem>>, %arg9: memref<2x1xf32, #tpu.memory_space<vmem>>, %arg10: memref<8x2xf32, #tpu.memory_space<vmem>>, %arg11: memref<8x1xf32, #tpu.memory_space<vmem>>, %arg12: memref<8x1xf32, #tpu.memory_space<vmem>>, %arg13: memref<8x1xf32, #tpu.memory_space<vmem>>, %arg14: memref<4x8xf32, #tpu.memory_space<vmem>>, %arg15: memref<4x1xf32, #tpu.memory_space<vmem>>, %arg16: memref<2x4x256xf32, #tpu.memory_space<vmem>>) attributes {dimension_semantics = [], scalar_prefetch = 0 : i64, scratch_operands = 0 : i64, tpu.core_type = #tpu.core_type<tc>} {
    %c0 = arith.constant 0 : index
    %c0_0 = arith.constant 0 : index
    %c0_1 = arith.constant 0 : index
    %0 = vector.load %arg0[%c0, %c0_0, %c0_1] : memref<2x4x256xf32, #tpu.memory_space<vmem>>, vector<1x4x256xf32>
    %1 = vector.shape_cast %0 : vector<1x4x256xf32> to vector<4x256xf32>
    %c1 = arith.constant 1 : index
    %c0_2 = arith.constant 0 : index
    %c0_3 = arith.constant 0 : index
    %2 = vector.load %arg0[%c1, %c0_2, %c0_3] : memref<2x4x256xf32, #tpu.memory_space<vmem>>, vector<1x4x256xf32>
    %3 = vector.shape_cast %2 : vector<1x4x256xf32> to vector<4x256xf32>
    %4 = tpu.concatenate %1, %3 in 1 : vector<4x256xf32>, vector<4x256xf32> -> vector<4x512xf32>
    %c0_4 = arith.constant 0 : index
    %c0_5 = arith.constant 0 : index
    %5 = vector.load %arg2[%c0_4, %c0_5] : memref<4x1xf32, #tpu.memory_space<vmem>>, vector<4x1xf32>
    %c0_6 = arith.constant 0 : index
    %c0_7 = arith.constant 0 : index
    %6 = vector.load %arg3[%c0_6, %c0_7] : memref<4x1xf32, #tpu.memory_space<vmem>>, vector<4x1xf32>
    %cst = arith.constant dense<0.000000e+00> : vector<4xf32>
    %7 = vector.multi_reduction <add>, %4, %cst [1] : vector<4x512xf32> to vector<4xf32>
    %8 = vector.shape_cast %7 : vector<4xf32> to vector<4x1xf32>
    %cst_8 = arith.constant 0.001953125 : f32
    %9 = vector.broadcast %cst_8 : f32 to vector<4x1xf32>
    %10 = arith.mulf %8, %9 : vector<4x1xf32>
    %11 = vector.broadcast %10 : vector<4x1xf32> to vector<4x512xf32>
    %12 = arith.subf %4, %11 : vector<4x512xf32>
    %13 = arith.mulf %12, %12 : vector<4x512xf32>
    %cst_9 = arith.constant dense<0.000000e+00> : vector<4xf32>
    %14 = vector.multi_reduction <add>, %13, %cst_9 [1] : vector<4x512xf32> to vector<4xf32>
    %15 = vector.shape_cast %14 : vector<4xf32> to vector<4x1xf32>
    %cst_10 = arith.constant 0.001953125 : f32
    %16 = vector.broadcast %cst_10 : f32 to vector<4x1xf32>
    %17 = arith.mulf %15, %16 : vector<4x1xf32>
    %cst_11 = arith.constant 9.99999974E-6 : f32
    %18 = vector.broadcast %cst_11 : f32 to vector<4x1xf32>
    %19 = arith.addf %17, %18 : vector<4x1xf32>
    %20 = math.rsqrt %19 : vector<4x1xf32>
    %21 = vector.broadcast %20 : vector<4x1xf32> to vector<4x512xf32>
    %22 = arith.mulf %12, %21 : vector<4x512xf32>
    %23 = vector.broadcast %5 : vector<4x1xf32> to vector<4x512xf32>
    %24 = arith.mulf %22, %23 : vector<4x512xf32>
    %25 = vector.broadcast %6 : vector<4x1xf32> to vector<4x512xf32>
    %26 = arith.addf %24, %25 : vector<4x512xf32>
    %c0_12 = arith.constant 0 : index
    %c0_13 = arith.constant 0 : index
    %27 = vector.load %arg4[%c0_12, %c0_13] : memref<16x4xf32, #tpu.memory_space<vmem>>, vector<16x4xf32>
    %c0_14 = arith.constant 0 : index
    %c0_15 = arith.constant 0 : index
    %28 = vector.load %arg5[%c0_14, %c0_15] : memref<16x1xf32, #tpu.memory_space<vmem>>, vector<16x1xf32>
    %29 = vector.extract_strided_slice %27 {offsets = [0, 0], sizes = [16, 1], strides = [1, 1]} : vector<16x4xf32> to vector<16x1xf32>
    %30 = vector.extract_strided_slice %26 {offsets = [0, 0], sizes = [1, 512], strides = [1, 1]} : vector<4x512xf32> to vector<1x512xf32>
    %31 = vector.broadcast %29 : vector<16x1xf32> to vector<16x512xf32>
    %32 = vector.broadcast %30 : vector<1x512xf32> to vector<16x512xf32>
    %33 = arith.mulf %31, %32 : vector<16x512xf32>
    %34 = vector.extract_strided_slice %27 {offsets = [0, 1], sizes = [16, 1], strides = [1, 1]} : vector<16x4xf32> to vector<16x1xf32>
    %35 = vector.extract_strided_slice %26 {offsets = [1, 0], sizes = [1, 512], strides = [1, 1]} : vector<4x512xf32> to vector<1x512xf32>
    %36 = vector.broadcast %34 : vector<16x1xf32> to vector<16x512xf32>
    %37 = vector.broadcast %35 : vector<1x512xf32> to vector<16x512xf32>
    %38 = arith.mulf %36, %37 : vector<16x512xf32>
    %39 = arith.addf %33, %38 : vector<16x512xf32>
    %40 = vector.extract_strided_slice %27 {offsets = [0, 2], sizes = [16, 1], strides = [1, 1]} : vector<16x4xf32> to vector<16x1xf32>
    %41 = vector.extract_strided_slice %26 {offsets = [2, 0], sizes = [1, 512], strides = [1, 1]} : vector<4x512xf32> to vector<1x512xf32>
    %42 = vector.broadcast %40 : vector<16x1xf32> to vector<16x512xf32>
    %43 = vector.broadcast %41 : vector<1x512xf32> to vector<16x512xf32>
    %44 = arith.mulf %42, %43 : vector<16x512xf32>
    %45 = arith.addf %39, %44 : vector<16x512xf32>
    %46 = vector.extract_strided_slice %27 {offsets = [0, 3], sizes = [16, 1], strides = [1, 1]} : vector<16x4xf32> to vector<16x1xf32>
    %47 = vector.extract_strided_slice %26 {offsets = [3, 0], sizes = [1, 512], strides = [1, 1]} : vector<4x512xf32> to vector<1x512xf32>
    %48 = vector.broadcast %46 : vector<16x1xf32> to vector<16x512xf32>
    %49 = vector.broadcast %47 : vector<1x512xf32> to vector<16x512xf32>
    %50 = arith.mulf %48, %49 : vector<16x512xf32>
    %51 = arith.addf %45, %50 : vector<16x512xf32>
    %52 = vector.broadcast %28 : vector<16x1xf32> to vector<16x512xf32>
    %53 = arith.addf %51, %52 : vector<16x512xf32>
    %54 = vector.extract_strided_slice %53 {offsets = [0, 0], sizes = [8, 512], strides = [1, 1]} : vector<16x512xf32> to vector<8x512xf32>
    %55 = vector.extract_strided_slice %53 {offsets = [8, 0], sizes = [8, 512], strides = [1, 1]} : vector<16x512xf32> to vector<8x512xf32>
    %c0_16 = arith.constant 0 : index
    %c0_17 = arith.constant 0 : index
    %56 = vector.load %arg1[%c0_16, %c0_17] : memref<6x512xf32, #tpu.memory_space<vmem>>, vector<6x512xf32>
    %57 = vector.extract_strided_slice %56 {offsets = [0, 0], sizes = [1, 512], strides = [1, 1]} : vector<6x512xf32> to vector<1x512xf32>
    %58 = vector.extract_strided_slice %56 {offsets = [1, 0], sizes = [1, 512], strides = [1, 1]} : vector<6x512xf32> to vector<1x512xf32>
    %59 = vector.extract_strided_slice %56 {offsets = [2, 0], sizes = [1, 512], strides = [1, 1]} : vector<6x512xf32> to vector<1x512xf32>
    %60 = vector.extract_strided_slice %56 {offsets = [3, 0], sizes = [1, 512], strides = [1, 1]} : vector<6x512xf32> to vector<1x512xf32>
    %c0_18 = arith.constant 0 : index
    %c0_19 = arith.constant 0 : index
    %61 = vector.load %arg6[%c0_18, %c0_19] : memref<8x9xf32, #tpu.memory_space<vmem>>, vector<8x9xf32>
    %62 = vector.broadcast %57 : vector<1x512xf32> to vector<8x512xf32>
    %63 = arith.mulf %54, %62 : vector<8x512xf32>
    %64 = vector.broadcast %58 : vector<1x512xf32> to vector<8x512xf32>
    %65 = arith.mulf %54, %64 : vector<8x512xf32>
    %c1_i32 = arith.constant 1 : i32
    %66 = tpu.dynamic_rotate %63 by %c1_i32 dim 1 : vector<8x512xf32>, i32 -> vector<8x512xf32>
    %67 = vector.extract_strided_slice %61 {offsets = [0, 3], sizes = [8, 1], strides = [1, 1]} : vector<8x9xf32> to vector<8x1xf32>
    %68 = vector.broadcast %67 : vector<8x1xf32> to vector<8x512xf32>
    %69 = arith.mulf %66, %68 : vector<8x512xf32>
    %70 = vector.extract_strided_slice %61 {offsets = [0, 4], sizes = [8, 1], strides = [1, 1]} : vector<8x9xf32> to vector<8x1xf32>
    %71 = vector.broadcast %70 : vector<8x1xf32> to vector<8x512xf32>
    %72 = arith.mulf %54, %71 : vector<8x512xf32>
    %73 = arith.addf %69, %72 : vector<8x512xf32>
    %c511_i32 = arith.constant 511 : i32
    %74 = tpu.dynamic_rotate %65 by %c511_i32 dim 1 : vector<8x512xf32>, i32 -> vector<8x512xf32>
    %75 = vector.extract_strided_slice %61 {offsets = [0, 5], sizes = [8, 1], strides = [1, 1]} : vector<8x9xf32> to vector<8x1xf32>
    %76 = vector.broadcast %75 : vector<8x1xf32> to vector<8x512xf32>
    %77 = arith.mulf %74, %76 : vector<8x512xf32>
    %78 = arith.addf %73, %77 : vector<8x512xf32>
    %c17_i32 = arith.constant 17 : i32
    %79 = tpu.dynamic_rotate %63 by %c17_i32 dim 1 : vector<8x512xf32>, i32 -> vector<8x512xf32>
    %80 = vector.extract_strided_slice %61 {offsets = [0, 0], sizes = [8, 1], strides = [1, 1]} : vector<8x9xf32> to vector<8x1xf32>
    %81 = vector.broadcast %80 : vector<8x1xf32> to vector<8x512xf32>
    %82 = arith.mulf %79, %81 : vector<8x512xf32>
    %c16_i32 = arith.constant 16 : i32
    %83 = tpu.dynamic_rotate %54 by %c16_i32 dim 1 : vector<8x512xf32>, i32 -> vector<8x512xf32>
    %84 = vector.extract_strided_slice %61 {offsets = [0, 1], sizes = [8, 1], strides = [1, 1]} : vector<8x9xf32> to vector<8x1xf32>
    %85 = vector.broadcast %84 : vector<8x1xf32> to vector<8x512xf32>
    %86 = arith.mulf %83, %85 : vector<8x512xf32>
    %87 = arith.addf %82, %86 : vector<8x512xf32>
    %c15_i32 = arith.constant 15 : i32
    %88 = tpu.dynamic_rotate %65 by %c15_i32 dim 1 : vector<8x512xf32>, i32 -> vector<8x512xf32>
    %89 = vector.extract_strided_slice %61 {offsets = [0, 2], sizes = [8, 1], strides = [1, 1]} : vector<8x9xf32> to vector<8x1xf32>
    %90 = vector.broadcast %89 : vector<8x1xf32> to vector<8x512xf32>
    %91 = arith.mulf %88, %90 : vector<8x512xf32>
    %92 = arith.addf %87, %91 : vector<8x512xf32>
    %93 = vector.broadcast %59 : vector<1x512xf32> to vector<8x512xf32>
    %94 = arith.mulf %92, %93 : vector<8x512xf32>
    %95 = arith.addf %78, %94 : vector<8x512xf32>
    %c497_i32 = arith.constant 497 : i32
    %96 = tpu.dynamic_rotate %63 by %c497_i32 dim 1 : vector<8x512xf32>, i32 -> vector<8x512xf32>
    %97 = vector.extract_strided_slice %61 {offsets = [0, 6], sizes = [8, 1], strides = [1, 1]} : vector<8x9xf32> to vector<8x1xf32>
    %98 = vector.broadcast %97 : vector<8x1xf32> to vector<8x512xf32>
    %99 = arith.mulf %96, %98 : vector<8x512xf32>
    %c496_i32 = arith.constant 496 : i32
    %100 = tpu.dynamic_rotate %54 by %c496_i32 dim 1 : vector<8x512xf32>, i32 -> vector<8x512xf32>
    %101 = vector.extract_strided_slice %61 {offsets = [0, 7], sizes = [8, 1], strides = [1, 1]} : vector<8x9xf32> to vector<8x1xf32>
    %102 = vector.broadcast %101 : vector<8x1xf32> to vector<8x512xf32>
    %103 = arith.mulf %100, %102 : vector<8x512xf32>
    %104 = arith.addf %99, %103 : vector<8x512xf32>
    %c495_i32 = arith.constant 495 : i32
    %105 = tpu.dynamic_rotate %65 by %c495_i32 dim 1 : vector<8x512xf32>, i32 -> vector<8x512xf32>
    %106 = vector.extract_strided_slice %61 {offsets = [0, 8], sizes = [8, 1], strides = [1, 1]} : vector<8x9xf32> to vector<8x1xf32>
    %107 = vector.broadcast %106 : vector<8x1xf32> to vector<8x512xf32>
    %108 = arith.mulf %105, %107 : vector<8x512xf32>
    %109 = arith.addf %104, %108 : vector<8x512xf32>
    %110 = vector.broadcast %60 : vector<1x512xf32> to vector<8x512xf32>
    %111 = arith.mulf %109, %110 : vector<8x512xf32>
    %112 = arith.addf %95, %111 : vector<8x512xf32>
    %c0_20 = arith.constant 0 : index
    %c0_21 = arith.constant 0 : index
    %113 = vector.load %arg7[%c0_20, %c0_21] : memref<8x1xf32, #tpu.memory_space<vmem>>, vector<8x1xf32>
    %114 = vector.broadcast %113 : vector<8x1xf32> to vector<8x512xf32>
    %115 = arith.addf %112, %114 : vector<8x512xf32>
    %cst_22 = arith.constant 5.000000e-01 : f32
    %116 = vector.broadcast %cst_22 : f32 to vector<8x512xf32>
    %117 = arith.mulf %116, %115 : vector<8x512xf32>
    %cst_23 = arith.constant 0.707106769 : f32
    %118 = vector.broadcast %cst_23 : f32 to vector<8x512xf32>
    %119 = arith.mulf %115, %118 : vector<8x512xf32>
    %cst_24 = arith.constant 0.000000e+00 : f32
    %120 = vector.broadcast %cst_24 : f32 to vector<8x512xf32>
    %121 = arith.cmpf olt, %119, %120 : vector<8x512xf32>
    %cst_25 = arith.constant -1.000000e+00 : f32
    %cst_26 = arith.constant 1.000000e+00 : f32
    %122 = vector.broadcast %cst_25 : f32 to vector<8x512xf32>
    %123 = vector.broadcast %cst_26 : f32 to vector<8x512xf32>
    %124 = arith.select %121, %122, %123 : vector<8x512xi1>, vector<8x512xf32>
    %125 = math.absf %119 : vector<8x512xf32>
    %cst_27 = arith.constant 0.327591091 : f32
    %126 = vector.broadcast %cst_27 : f32 to vector<8x512xf32>
    %127 = arith.mulf %126, %125 : vector<8x512xf32>
    %cst_28 = arith.constant 1.000000e+00 : f32
    %128 = vector.broadcast %cst_28 : f32 to vector<8x512xf32>
    %129 = arith.addf %128, %127 : vector<8x512xf32>
    %130 = tpu.reciprocal %129 {approx = true} : vector<8x512xf32> -> vector<8x512xf32>
    %131 = arith.mulf %129, %130 : vector<8x512xf32>
    %cst_29 = arith.constant 2.000000e+00 : f32
    %132 = vector.broadcast %cst_29 : f32 to vector<8x512xf32>
    %133 = arith.subf %132, %131 : vector<8x512xf32>
    %134 = arith.mulf %130, %133 : vector<8x512xf32>
    %cst_30 = arith.constant 1.06140542 : f32
    %135 = vector.broadcast %cst_30 : f32 to vector<8x512xf32>
    %136 = arith.mulf %135, %134 : vector<8x512xf32>
    %cst_31 = arith.constant -1.45315206 : f32
    %137 = vector.broadcast %cst_31 : f32 to vector<8x512xf32>
    %138 = arith.addf %136, %137 : vector<8x512xf32>
    %139 = arith.mulf %138, %134 : vector<8x512xf32>
    %cst_32 = arith.constant 1.42141378 : f32
    %140 = vector.broadcast %cst_32 : f32 to vector<8x512xf32>
    %141 = arith.addf %139, %140 : vector<8x512xf32>
    %142 = arith.mulf %141, %134 : vector<8x512xf32>
    %cst_33 = arith.constant -0.284496725 : f32
    %143 = vector.broadcast %cst_33 : f32 to vector<8x512xf32>
    %144 = arith.addf %142, %143 : vector<8x512xf32>
    %145 = arith.mulf %144, %134 : vector<8x512xf32>
    %cst_34 = arith.constant 0.254829586 : f32
    %146 = vector.broadcast %cst_34 : f32 to vector<8x512xf32>
    %147 = arith.addf %145, %146 : vector<8x512xf32>
    %148 = arith.mulf %147, %134 : vector<8x512xf32>
    %cst_35 = arith.constant 0.000000e+00 : f32
    %149 = vector.broadcast %cst_35 : f32 to vector<8x512xf32>
    %150 = arith.subf %149, %125 : vector<8x512xf32>
    %151 = arith.mulf %150, %125 : vector<8x512xf32>
    %152 = math.exp %151 : vector<8x512xf32>
    %153 = arith.mulf %148, %152 : vector<8x512xf32>
    %cst_36 = arith.constant 1.000000e+00 : f32
    %154 = vector.broadcast %cst_36 : f32 to vector<8x512xf32>
    %155 = arith.subf %154, %153 : vector<8x512xf32>
    %156 = arith.mulf %124, %155 : vector<8x512xf32>
    %cst_37 = arith.constant 1.000000e+00 : f32
    %157 = vector.broadcast %cst_37 : f32 to vector<8x512xf32>
    %158 = arith.addf %157, %156 : vector<8x512xf32>
    %159 = arith.mulf %117, %158 : vector<8x512xf32>
    %160 = vector.extract_strided_slice %159 {offsets = [0, 0], sizes = [8, 256], strides = [1, 1]} : vector<8x512xf32> to vector<8x256xf32>
    %cst_38 = arith.constant dense<0.000000e+00> : vector<8xf32>
    %161 = vector.multi_reduction <add>, %160, %cst_38 [1] : vector<8x256xf32> to vector<8xf32>
    %162 = vector.shape_cast %161 : vector<8xf32> to vector<8x1xf32>
    %cst_39 = arith.constant 3.906250e-03 : f32
    %163 = vector.broadcast %cst_39 : f32 to vector<8x1xf32>
    %164 = arith.mulf %162, %163 : vector<8x1xf32>
    %165 = vector.extract_strided_slice %159 {offsets = [0, 256], sizes = [8, 256], strides = [1, 1]} : vector<8x512xf32> to vector<8x256xf32>
    %cst_40 = arith.constant dense<0.000000e+00> : vector<8xf32>
    %166 = vector.multi_reduction <add>, %165, %cst_40 [1] : vector<8x256xf32> to vector<8xf32>
    %167 = vector.shape_cast %166 : vector<8xf32> to vector<8x1xf32>
    %cst_41 = arith.constant 3.906250e-03 : f32
    %168 = vector.broadcast %cst_41 : f32 to vector<8x1xf32>
    %169 = arith.mulf %167, %168 : vector<8x1xf32>
    %170 = tpu.concatenate %164, %169 in 1 : vector<8x1xf32>, vector<8x1xf32> -> vector<8x2xf32>
    %c0_42 = arith.constant 0 : index
    %c0_43 = arith.constant 0 : index
    %171 = vector.load %arg8[%c0_42, %c0_43] : memref<2x8xf32, #tpu.memory_space<vmem>>, vector<2x8xf32>
    %c0_44 = arith.constant 0 : index
    %c0_45 = arith.constant 0 : index
    %172 = vector.load %arg9[%c0_44, %c0_45] : memref<2x1xf32, #tpu.memory_space<vmem>>, vector<2x1xf32>
    %173 = vector.extract_strided_slice %171 {offsets = [0, 0], sizes = [2, 1], strides = [1, 1]} : vector<2x8xf32> to vector<2x1xf32>
    %174 = vector.extract_strided_slice %170 {offsets = [0, 0], sizes = [1, 2], strides = [1, 1]} : vector<8x2xf32> to vector<1x2xf32>
    %175 = vector.broadcast %173 : vector<2x1xf32> to vector<2x2xf32>
    %176 = vector.broadcast %174 : vector<1x2xf32> to vector<2x2xf32>
    %177 = arith.mulf %175, %176 : vector<2x2xf32>
    %178 = vector.extract_strided_slice %171 {offsets = [0, 1], sizes = [2, 1], strides = [1, 1]} : vector<2x8xf32> to vector<2x1xf32>
    %179 = vector.extract_strided_slice %170 {offsets = [1, 0], sizes = [1, 2], strides = [1, 1]} : vector<8x2xf32> to vector<1x2xf32>
    %180 = vector.broadcast %178 : vector<2x1xf32> to vector<2x2xf32>
    %181 = vector.broadcast %179 : vector<1x2xf32> to vector<2x2xf32>
    %182 = arith.mulf %180, %181 : vector<2x2xf32>
    %183 = arith.addf %177, %182 : vector<2x2xf32>
    %184 = vector.extract_strided_slice %171 {offsets = [0, 2], sizes = [2, 1], strides = [1, 1]} : vector<2x8xf32> to vector<2x1xf32>
    %185 = vector.extract_strided_slice %170 {offsets = [2, 0], sizes = [1, 2], strides = [1, 1]} : vector<8x2xf32> to vector<1x2xf32>
    %186 = vector.broadcast %184 : vector<2x1xf32> to vector<2x2xf32>
    %187 = vector.broadcast %185 : vector<1x2xf32> to vector<2x2xf32>
    %188 = arith.mulf %186, %187 : vector<2x2xf32>
    %189 = arith.addf %183, %188 : vector<2x2xf32>
    %190 = vector.extract_strided_slice %171 {offsets = [0, 3], sizes = [2, 1], strides = [1, 1]} : vector<2x8xf32> to vector<2x1xf32>
    %191 = vector.extract_strided_slice %170 {offsets = [3, 0], sizes = [1, 2], strides = [1, 1]} : vector<8x2xf32> to vector<1x2xf32>
    %192 = vector.broadcast %190 : vector<2x1xf32> to vector<2x2xf32>
    %193 = vector.broadcast %191 : vector<1x2xf32> to vector<2x2xf32>
    %194 = arith.mulf %192, %193 : vector<2x2xf32>
    %195 = arith.addf %189, %194 : vector<2x2xf32>
    %196 = vector.extract_strided_slice %171 {offsets = [0, 4], sizes = [2, 1], strides = [1, 1]} : vector<2x8xf32> to vector<2x1xf32>
    %197 = vector.extract_strided_slice %170 {offsets = [4, 0], sizes = [1, 2], strides = [1, 1]} : vector<8x2xf32> to vector<1x2xf32>
    %198 = vector.broadcast %196 : vector<2x1xf32> to vector<2x2xf32>
    %199 = vector.broadcast %197 : vector<1x2xf32> to vector<2x2xf32>
    %200 = arith.mulf %198, %199 : vector<2x2xf32>
    %201 = arith.addf %195, %200 : vector<2x2xf32>
    %202 = vector.extract_strided_slice %171 {offsets = [0, 5], sizes = [2, 1], strides = [1, 1]} : vector<2x8xf32> to vector<2x1xf32>
    %203 = vector.extract_strided_slice %170 {offsets = [5, 0], sizes = [1, 2], strides = [1, 1]} : vector<8x2xf32> to vector<1x2xf32>
    %204 = vector.broadcast %202 : vector<2x1xf32> to vector<2x2xf32>
    %205 = vector.broadcast %203 : vector<1x2xf32> to vector<2x2xf32>
    %206 = arith.mulf %204, %205 : vector<2x2xf32>
    %207 = arith.addf %201, %206 : vector<2x2xf32>
    %208 = vector.extract_strided_slice %171 {offsets = [0, 6], sizes = [2, 1], strides = [1, 1]} : vector<2x8xf32> to vector<2x1xf32>
    %209 = vector.extract_strided_slice %170 {offsets = [6, 0], sizes = [1, 2], strides = [1, 1]} : vector<8x2xf32> to vector<1x2xf32>
    %210 = vector.broadcast %208 : vector<2x1xf32> to vector<2x2xf32>
    %211 = vector.broadcast %209 : vector<1x2xf32> to vector<2x2xf32>
    %212 = arith.mulf %210, %211 : vector<2x2xf32>
    %213 = arith.addf %207, %212 : vector<2x2xf32>
    %214 = vector.extract_strided_slice %171 {offsets = [0, 7], sizes = [2, 1], strides = [1, 1]} : vector<2x8xf32> to vector<2x1xf32>
    %215 = vector.extract_strided_slice %170 {offsets = [7, 0], sizes = [1, 2], strides = [1, 1]} : vector<8x2xf32> to vector<1x2xf32>
    %216 = vector.broadcast %214 : vector<2x1xf32> to vector<2x2xf32>
    %217 = vector.broadcast %215 : vector<1x2xf32> to vector<2x2xf32>
    %218 = arith.mulf %216, %217 : vector<2x2xf32>
    %219 = arith.addf %213, %218 : vector<2x2xf32>
    %220 = vector.broadcast %172 : vector<2x1xf32> to vector<2x2xf32>
    %221 = arith.addf %219, %220 : vector<2x2xf32>
    %cst_46 = arith.constant 0.000000e+00 : f32
    %222 = vector.broadcast %cst_46 : f32 to vector<2x2xf32>
    %223 = arith.maximumf %221, %222 : vector<2x2xf32>
    %c0_47 = arith.constant 0 : index
    %c0_48 = arith.constant 0 : index
    %224 = vector.load %arg10[%c0_47, %c0_48] : memref<8x2xf32, #tpu.memory_space<vmem>>, vector<8x2xf32>
    %c0_49 = arith.constant 0 : index
    %c0_50 = arith.constant 0 : index
    %225 = vector.load %arg11[%c0_49, %c0_50] : memref<8x1xf32, #tpu.memory_space<vmem>>, vector<8x1xf32>
    %226 = vector.extract_strided_slice %224 {offsets = [0, 0], sizes = [8, 1], strides = [1, 1]} : vector<8x2xf32> to vector<8x1xf32>
    %227 = vector.extract_strided_slice %223 {offsets = [0, 0], sizes = [1, 2], strides = [1, 1]} : vector<2x2xf32> to vector<1x2xf32>
    %228 = vector.broadcast %226 : vector<8x1xf32> to vector<8x2xf32>
    %229 = vector.broadcast %227 : vector<1x2xf32> to vector<8x2xf32>
    %230 = arith.mulf %228, %229 : vector<8x2xf32>
    %231 = vector.extract_strided_slice %224 {offsets = [0, 1], sizes = [8, 1], strides = [1, 1]} : vector<8x2xf32> to vector<8x1xf32>
    %232 = vector.extract_strided_slice %223 {offsets = [1, 0], sizes = [1, 2], strides = [1, 1]} : vector<2x2xf32> to vector<1x2xf32>
    %233 = vector.broadcast %231 : vector<8x1xf32> to vector<8x2xf32>
    %234 = vector.broadcast %232 : vector<1x2xf32> to vector<8x2xf32>
    %235 = arith.mulf %233, %234 : vector<8x2xf32>
    %236 = arith.addf %230, %235 : vector<8x2xf32>
    %237 = vector.broadcast %225 : vector<8x1xf32> to vector<8x2xf32>
    %238 = arith.addf %236, %237 : vector<8x2xf32>
    %239 = math.absf %238 : vector<8x2xf32>
    %cst_51 = arith.constant 0.000000e+00 : f32
    %240 = vector.broadcast %cst_51 : f32 to vector<8x2xf32>
    %241 = arith.subf %240, %239 : vector<8x2xf32>
    %242 = math.exp %241 : vector<8x2xf32>
    %cst_52 = arith.constant 1.000000e+00 : f32
    %243 = vector.broadcast %cst_52 : f32 to vector<8x2xf32>
    %244 = arith.addf %243, %242 : vector<8x2xf32>
    %245 = tpu.reciprocal %244 {approx = true} : vector<8x2xf32> -> vector<8x2xf32>
    %246 = arith.mulf %244, %245 : vector<8x2xf32>
    %cst_53 = arith.constant 2.000000e+00 : f32
    %247 = vector.broadcast %cst_53 : f32 to vector<8x2xf32>
    %248 = arith.subf %247, %246 : vector<8x2xf32>
    %249 = arith.mulf %245, %248 : vector<8x2xf32>
    %cst_54 = arith.constant 0.000000e+00 : f32
    %250 = vector.broadcast %cst_54 : f32 to vector<8x2xf32>
    %251 = arith.cmpf oge, %238, %250 : vector<8x2xf32>
    %252 = arith.mulf %242, %249 : vector<8x2xf32>
    %253 = arith.select %251, %249, %252 : vector<8x2xi1>, vector<8x2xf32>
    %254 = vector.extract_strided_slice %253 {offsets = [0, 0], sizes = [8, 1], strides = [1, 1]} : vector<8x2xf32> to vector<8x1xf32>
    %255 = vector.extract_strided_slice %56 {offsets = [4, 0], sizes = [1, 512], strides = [1, 1]} : vector<6x512xf32> to vector<1x512xf32>
    %256 = vector.broadcast %254 : vector<8x1xf32> to vector<8x512xf32>
    %257 = vector.broadcast %255 : vector<1x512xf32> to vector<8x512xf32>
    %258 = arith.mulf %256, %257 : vector<8x512xf32>
    %259 = vector.extract_strided_slice %253 {offsets = [0, 1], sizes = [8, 1], strides = [1, 1]} : vector<8x2xf32> to vector<8x1xf32>
    %260 = vector.extract_strided_slice %56 {offsets = [5, 0], sizes = [1, 512], strides = [1, 1]} : vector<6x512xf32> to vector<1x512xf32>
    %261 = vector.broadcast %259 : vector<8x1xf32> to vector<8x512xf32>
    %262 = vector.broadcast %260 : vector<1x512xf32> to vector<8x512xf32>
    %263 = arith.mulf %261, %262 : vector<8x512xf32>
    %264 = arith.addf %258, %263 : vector<8x512xf32>
    %265 = arith.mulf %159, %264 : vector<8x512xf32>
    %c0_55 = arith.constant 0 : index
    %c0_56 = arith.constant 0 : index
    %266 = vector.load %arg12[%c0_55, %c0_56] : memref<8x1xf32, #tpu.memory_space<vmem>>, vector<8x1xf32>
    %c0_57 = arith.constant 0 : index
    %c0_58 = arith.constant 0 : index
    %267 = vector.load %arg13[%c0_57, %c0_58] : memref<8x1xf32, #tpu.memory_space<vmem>>, vector<8x1xf32>
    %cst_59 = arith.constant dense<0.000000e+00> : vector<8xf32>
    %268 = vector.multi_reduction <add>, %265, %cst_59 [1] : vector<8x512xf32> to vector<8xf32>
    %269 = vector.shape_cast %268 : vector<8xf32> to vector<8x1xf32>
    %cst_60 = arith.constant 0.001953125 : f32
    %270 = vector.broadcast %cst_60 : f32 to vector<8x1xf32>
    %271 = arith.mulf %269, %270 : vector<8x1xf32>
    %272 = vector.broadcast %271 : vector<8x1xf32> to vector<8x512xf32>
    %273 = arith.subf %265, %272 : vector<8x512xf32>
    %274 = arith.mulf %273, %273 : vector<8x512xf32>
    %cst_61 = arith.constant dense<0.000000e+00> : vector<8xf32>
    %275 = vector.multi_reduction <add>, %274, %cst_61 [1] : vector<8x512xf32> to vector<8xf32>
    %276 = vector.shape_cast %275 : vector<8xf32> to vector<8x1xf32>
    %cst_62 = arith.constant 0.001953125 : f32
    %277 = vector.broadcast %cst_62 : f32 to vector<8x1xf32>
    %278 = arith.mulf %276, %277 : vector<8x1xf32>
    %cst_63 = arith.constant 9.99999974E-6 : f32
    %279 = vector.broadcast %cst_63 : f32 to vector<8x1xf32>
    %280 = arith.addf %278, %279 : vector<8x1xf32>
    %281 = math.rsqrt %280 : vector<8x1xf32>
    %282 = vector.broadcast %281 : vector<8x1xf32> to vector<8x512xf32>
    %283 = arith.mulf %273, %282 : vector<8x512xf32>
    %284 = vector.broadcast %266 : vector<8x1xf32> to vector<8x512xf32>
    %285 = arith.mulf %283, %284 : vector<8x512xf32>
    %286 = vector.broadcast %267 : vector<8x1xf32> to vector<8x512xf32>
    %287 = arith.addf %285, %286 : vector<8x512xf32>
    %cst_64 = arith.constant 5.000000e-01 : f32
    %288 = vector.broadcast %cst_64 : f32 to vector<8x512xf32>
    %289 = arith.mulf %288, %55 : vector<8x512xf32>
    %cst_65 = arith.constant 0.707106769 : f32
    %290 = vector.broadcast %cst_65 : f32 to vector<8x512xf32>
    %291 = arith.mulf %55, %290 : vector<8x512xf32>
    %cst_66 = arith.constant 0.000000e+00 : f32
    %292 = vector.broadcast %cst_66 : f32 to vector<8x512xf32>
    %293 = arith.cmpf olt, %291, %292 : vector<8x512xf32>
    %cst_67 = arith.constant -1.000000e+00 : f32
    %cst_68 = arith.constant 1.000000e+00 : f32
    %294 = vector.broadcast %cst_67 : f32 to vector<8x512xf32>
    %295 = vector.broadcast %cst_68 : f32 to vector<8x512xf32>
    %296 = arith.select %293, %294, %295 : vector<8x512xi1>, vector<8x512xf32>
    %297 = math.absf %291 : vector<8x512xf32>
    %cst_69 = arith.constant 0.327591091 : f32
    %298 = vector.broadcast %cst_69 : f32 to vector<8x512xf32>
    %299 = arith.mulf %298, %297 : vector<8x512xf32>
    %cst_70 = arith.constant 1.000000e+00 : f32
    %300 = vector.broadcast %cst_70 : f32 to vector<8x512xf32>
    %301 = arith.addf %300, %299 : vector<8x512xf32>
    %302 = tpu.reciprocal %301 {approx = true} : vector<8x512xf32> -> vector<8x512xf32>
    %303 = arith.mulf %301, %302 : vector<8x512xf32>
    %cst_71 = arith.constant 2.000000e+00 : f32
    %304 = vector.broadcast %cst_71 : f32 to vector<8x512xf32>
    %305 = arith.subf %304, %303 : vector<8x512xf32>
    %306 = arith.mulf %302, %305 : vector<8x512xf32>
    %cst_72 = arith.constant 1.06140542 : f32
    %307 = vector.broadcast %cst_72 : f32 to vector<8x512xf32>
    %308 = arith.mulf %307, %306 : vector<8x512xf32>
    %cst_73 = arith.constant -1.45315206 : f32
    %309 = vector.broadcast %cst_73 : f32 to vector<8x512xf32>
    %310 = arith.addf %308, %309 : vector<8x512xf32>
    %311 = arith.mulf %310, %306 : vector<8x512xf32>
    %cst_74 = arith.constant 1.42141378 : f32
    %312 = vector.broadcast %cst_74 : f32 to vector<8x512xf32>
    %313 = arith.addf %311, %312 : vector<8x512xf32>
    %314 = arith.mulf %313, %306 : vector<8x512xf32>
    %cst_75 = arith.constant -0.284496725 : f32
    %315 = vector.broadcast %cst_75 : f32 to vector<8x512xf32>
    %316 = arith.addf %314, %315 : vector<8x512xf32>
    %317 = arith.mulf %316, %306 : vector<8x512xf32>
    %cst_76 = arith.constant 0.254829586 : f32
    %318 = vector.broadcast %cst_76 : f32 to vector<8x512xf32>
    %319 = arith.addf %317, %318 : vector<8x512xf32>
    %320 = arith.mulf %319, %306 : vector<8x512xf32>
    %cst_77 = arith.constant 0.000000e+00 : f32
    %321 = vector.broadcast %cst_77 : f32 to vector<8x512xf32>
    %322 = arith.subf %321, %297 : vector<8x512xf32>
    %323 = arith.mulf %322, %297 : vector<8x512xf32>
    %324 = math.exp %323 : vector<8x512xf32>
    %325 = arith.mulf %320, %324 : vector<8x512xf32>
    %cst_78 = arith.constant 1.000000e+00 : f32
    %326 = vector.broadcast %cst_78 : f32 to vector<8x512xf32>
    %327 = arith.subf %326, %325 : vector<8x512xf32>
    %328 = arith.mulf %296, %327 : vector<8x512xf32>
    %cst_79 = arith.constant 1.000000e+00 : f32
    %329 = vector.broadcast %cst_79 : f32 to vector<8x512xf32>
    %330 = arith.addf %329, %328 : vector<8x512xf32>
    %331 = arith.mulf %289, %330 : vector<8x512xf32>
    %332 = arith.mulf %287, %331 : vector<8x512xf32>
    %c0_80 = arith.constant 0 : index
    %c0_81 = arith.constant 0 : index
    %333 = vector.load %arg14[%c0_80, %c0_81] : memref<4x8xf32, #tpu.memory_space<vmem>>, vector<4x8xf32>
    %c0_82 = arith.constant 0 : index
    %c0_83 = arith.constant 0 : index
    %334 = vector.load %arg15[%c0_82, %c0_83] : memref<4x1xf32, #tpu.memory_space<vmem>>, vector<4x1xf32>
    %335 = vector.extract_strided_slice %333 {offsets = [0, 0], sizes = [4, 1], strides = [1, 1]} : vector<4x8xf32> to vector<4x1xf32>
    %336 = vector.extract_strided_slice %332 {offsets = [0, 0], sizes = [1, 512], strides = [1, 1]} : vector<8x512xf32> to vector<1x512xf32>
    %337 = vector.broadcast %335 : vector<4x1xf32> to vector<4x512xf32>
    %338 = vector.broadcast %336 : vector<1x512xf32> to vector<4x512xf32>
    %339 = arith.mulf %337, %338 : vector<4x512xf32>
    %340 = vector.extract_strided_slice %333 {offsets = [0, 1], sizes = [4, 1], strides = [1, 1]} : vector<4x8xf32> to vector<4x1xf32>
    %341 = vector.extract_strided_slice %332 {offsets = [1, 0], sizes = [1, 512], strides = [1, 1]} : vector<8x512xf32> to vector<1x512xf32>
    %342 = vector.broadcast %340 : vector<4x1xf32> to vector<4x512xf32>
    %343 = vector.broadcast %341 : vector<1x512xf32> to vector<4x512xf32>
    %344 = arith.mulf %342, %343 : vector<4x512xf32>
    %345 = arith.addf %339, %344 : vector<4x512xf32>
    %346 = vector.extract_strided_slice %333 {offsets = [0, 2], sizes = [4, 1], strides = [1, 1]} : vector<4x8xf32> to vector<4x1xf32>
    %347 = vector.extract_strided_slice %332 {offsets = [2, 0], sizes = [1, 512], strides = [1, 1]} : vector<8x512xf32> to vector<1x512xf32>
    %348 = vector.broadcast %346 : vector<4x1xf32> to vector<4x512xf32>
    %349 = vector.broadcast %347 : vector<1x512xf32> to vector<4x512xf32>
    %350 = arith.mulf %348, %349 : vector<4x512xf32>
    %351 = arith.addf %345, %350 : vector<4x512xf32>
    %352 = vector.extract_strided_slice %333 {offsets = [0, 3], sizes = [4, 1], strides = [1, 1]} : vector<4x8xf32> to vector<4x1xf32>
    %353 = vector.extract_strided_slice %332 {offsets = [3, 0], sizes = [1, 512], strides = [1, 1]} : vector<8x512xf32> to vector<1x512xf32>
    %354 = vector.broadcast %352 : vector<4x1xf32> to vector<4x512xf32>
    %355 = vector.broadcast %353 : vector<1x512xf32> to vector<4x512xf32>
    %356 = arith.mulf %354, %355 : vector<4x512xf32>
    %357 = arith.addf %351, %356 : vector<4x512xf32>
    %358 = vector.extract_strided_slice %333 {offsets = [0, 4], sizes = [4, 1], strides = [1, 1]} : vector<4x8xf32> to vector<4x1xf32>
    %359 = vector.extract_strided_slice %332 {offsets = [4, 0], sizes = [1, 512], strides = [1, 1]} : vector<8x512xf32> to vector<1x512xf32>
    %360 = vector.broadcast %358 : vector<4x1xf32> to vector<4x512xf32>
    %361 = vector.broadcast %359 : vector<1x512xf32> to vector<4x512xf32>
    %362 = arith.mulf %360, %361 : vector<4x512xf32>
    %363 = arith.addf %357, %362 : vector<4x512xf32>
    %364 = vector.extract_strided_slice %333 {offsets = [0, 5], sizes = [4, 1], strides = [1, 1]} : vector<4x8xf32> to vector<4x1xf32>
    %365 = vector.extract_strided_slice %332 {offsets = [5, 0], sizes = [1, 512], strides = [1, 1]} : vector<8x512xf32> to vector<1x512xf32>
    %366 = vector.broadcast %364 : vector<4x1xf32> to vector<4x512xf32>
    %367 = vector.broadcast %365 : vector<1x512xf32> to vector<4x512xf32>
    %368 = arith.mulf %366, %367 : vector<4x512xf32>
    %369 = arith.addf %363, %368 : vector<4x512xf32>
    %370 = vector.extract_strided_slice %333 {offsets = [0, 6], sizes = [4, 1], strides = [1, 1]} : vector<4x8xf32> to vector<4x1xf32>
    %371 = vector.extract_strided_slice %332 {offsets = [6, 0], sizes = [1, 512], strides = [1, 1]} : vector<8x512xf32> to vector<1x512xf32>
    %372 = vector.broadcast %370 : vector<4x1xf32> to vector<4x512xf32>
    %373 = vector.broadcast %371 : vector<1x512xf32> to vector<4x512xf32>
    %374 = arith.mulf %372, %373 : vector<4x512xf32>
    %375 = arith.addf %369, %374 : vector<4x512xf32>
    %376 = vector.extract_strided_slice %333 {offsets = [0, 7], sizes = [4, 1], strides = [1, 1]} : vector<4x8xf32> to vector<4x1xf32>
    %377 = vector.extract_strided_slice %332 {offsets = [7, 0], sizes = [1, 512], strides = [1, 1]} : vector<8x512xf32> to vector<1x512xf32>
    %378 = vector.broadcast %376 : vector<4x1xf32> to vector<4x512xf32>
    %379 = vector.broadcast %377 : vector<1x512xf32> to vector<4x512xf32>
    %380 = arith.mulf %378, %379 : vector<4x512xf32>
    %381 = arith.addf %375, %380 : vector<4x512xf32>
    %382 = vector.broadcast %334 : vector<4x1xf32> to vector<4x512xf32>
    %383 = arith.addf %381, %382 : vector<4x512xf32>
    %384 = arith.addf %383, %4 : vector<4x512xf32>
    %385 = vector.extract_strided_slice %384 {offsets = [0, 0], sizes = [4, 256], strides = [1, 1]} : vector<4x512xf32> to vector<4x256xf32>
    %c0_84 = arith.constant 0 : index
    %c0_85 = arith.constant 0 : index
    %c0_86 = arith.constant 0 : index
    %386 = vector.load %arg16[%c0_84, %c0_85, %c0_86] : memref<2x4x256xf32, #tpu.memory_space<vmem>>, vector<1x4x256xf32>
    %387 = vector.shape_cast %386 : vector<1x4x256xf32> to vector<4x256xf32>
    %388 = vector.shape_cast %385 : vector<4x256xf32> to vector<1x4x256xf32>
    tpu.vector_store %arg16[%c0_84, %c0_85, %c0_86], %388 {strides = array<i32>} : memref<2x4x256xf32, #tpu.memory_space<vmem>>, vector<1x4x256xf32>,
    %389 = vector.extract_strided_slice %384 {offsets = [0, 256], sizes = [4, 256], strides = [1, 1]} : vector<4x512xf32> to vector<4x256xf32>
    %c1_87 = arith.constant 1 : index
    %c0_88 = arith.constant 0 : index
    %c0_89 = arith.constant 0 : index
    %390 = vector.load %arg16[%c1_87, %c0_88, %c0_89] : memref<2x4x256xf32, #tpu.memory_space<vmem>>, vector<1x4x256xf32>
    %391 = vector.shape_cast %390 : vector<1x4x256xf32> to vector<4x256xf32>
    %392 = vector.shape_cast %389 : vector<4x256xf32> to vector<1x4x256xf32>
    tpu.vector_store %arg16[%c1_87, %c0_88, %c0_89], %392 {strides = array<i32>} : memref<2x4x256xf32, #tpu.memory_space<vmem>>, vector<1x4x256xf32>,
    return
  }
}

</mosaic_0001>

<llo_original>
// kernel: tpu_custom_call.1
$region0: #{tpu_custom_call.1}
  #allocation0 [shape = 'u32[]', space=smem, size = 0x4, offset = 0x4, fixed_abs, tag = 'smem constant byte address 0x4 - core index']
  #allocation1 [shape = 'u32[144,128]{1,0:T(1,128)}', space=vmem, size = 0x12000, scoped, tag = 'internal scratch']
  %s0 = inlined_call_operand.vmem [shape: f32[2,4,256], index: 0, kind: input, shape index: {}]
  %s1 = inlined_call_operand.vmem [shape: f32[6,512], index: 1, kind: input, shape index: {}]
  %s2 = inlined_call_operand.vmem [shape: f32[4,1], index: 2, kind: input, shape index: {}]
  %s3 = inlined_call_operand.vmem [shape: f32[4,1], index: 3, kind: input, shape index: {}]
  %s4 = inlined_call_operand.vmem [shape: f32[16,4], index: 4, kind: input, shape index: {}]
  %s5 = inlined_call_operand.vmem [shape: f32[16,1], index: 5, kind: input, shape index: {}]
  %s6 = inlined_call_operand.vmem [shape: f32[8,9], index: 6, kind: input, shape index: {}]
  %s7 = inlined_call_operand.vmem [shape: f32[8,1], index: 7, kind: input, shape index: {}]
  %s8 = inlined_call_operand.vmem [shape: f32[2,8], index: 8, kind: input, shape index: {}]
  %s9 = inlined_call_operand.vmem [shape: f32[2,1], index: 9, kind: input, shape index: {}]
  %s10 = inlined_call_operand.vmem [shape: f32[8,2], index: 10, kind: input, shape index: {}]
  %s11 = inlined_call_operand.vmem [shape: f32[8,1], index: 11, kind: input, shape index: {}]
  %s12 = inlined_call_operand.vmem [shape: f32[8,1], index: 12, kind: input, shape index: {}]
  %s13 = inlined_call_operand.vmem [shape: f32[8,1], index: 13, kind: input, shape index: {}]
  %s14 = inlined_call_operand.vmem [shape: f32[4,8], index: 14, kind: input, shape index: {}]
  %s15 = inlined_call_operand.vmem [shape: f32[4,1], index: 15, kind: input, shape index: {}]
  %s16 = inlined_call_operand.hbm [shape: f32[2,4,256], index: 16, kind: output, shape index: {}]
  %s17 = sld [smem:[#allocation0]]
  $region74: #{tpu_custom_call.1} parent=0
    _
  %s19 = ssub.s32 1, %s17
  %s20 = scalar_select 0, %s19, %s17
  $region1: #{tpu_custom_call.1} parent=0
    #allocation2 [shape = 'u8[8192]{0}', space=vmem, size = 0x2000, scoped, tag = 'output window, operand 0, single buffered']
    #allocation3 [shape = 's32[1]{0}', space=sflag, size = 0x4, scoped, tag = 'scoped memory for tpu_custom_call.1']
    %21 = vsyncpa [#allocation3], 0
    // Predicated region
    $region2: #{tpu_custom_call.1} parent=1 // pred_check
      _
    $region3: #{tpu_custom_call.1} parent=1 // pred_check_branch
      %23 = sbr.rel (0) target = $region5
    $region4: #{tpu_custom_call.1} parent=1 // pred_region
      _
    $region5: #{tpu_custom_call.1} parent=1 // pred_fallthru
      _
    // Predicated region
    $region6: #{tpu_custom_call.1} parent=1 // pred_check
      _
    $region7: #{tpu_custom_call.1} parent=1 // pred_check_branch
      %25 = sbr.rel (0) target = $region9
    $region8: #{tpu_custom_call.1} parent=1 // pred_region
      _
    $region9: #{tpu_custom_call.1} parent=1 // pred_fallthru
      _
    // Predicated region
    $region10: #{tpu_custom_call.1} parent=1 // pred_check
      _
    $region11: #{tpu_custom_call.1} parent=1 // pred_check_branch
      %27 = sbr.rel (0) target = $region13
    $region12: #{tpu_custom_call.1} parent=1 // pred_region
      _
    $region13: #{tpu_custom_call.1} parent=1 // pred_fallthru
      _
    // Predicated region
    $region14: #{tpu_custom_call.1} parent=1 // pred_check
      _
    $region15: #{tpu_custom_call.1} parent=1 // pred_check_branch
      %29 = sbr.rel (0) target = $region17
    $region16: #{tpu_custom_call.1} parent=1 // pred_region
      _
    $region17: #{tpu_custom_call.1} parent=1 // pred_fallthru
      _
    // Predicated region
    $region18: #{tpu_custom_call.1} parent=1 // pred_check
      _
    $region19: #{tpu_custom_call.1} parent=1 // pred_check_branch
      %31 = sbr.rel (0) target = $region21
    $region20: #{tpu_custom_call.1} parent=1 // pred_region
      _
    $region21: #{tpu_custom_call.1} parent=1 // pred_fallthru
      _
    // Predicated region
    $region22: #{tpu_custom_call.1} parent=1 // pred_check
      _
    $region23: #{tpu_custom_call.1} parent=1 // pred_check_branch
      %33 = sbr.rel (0) target = $region25
    $region24: #{tpu_custom_call.1} parent=1 // pred_region
      _
    $region25: #{tpu_custom_call.1} parent=1 // pred_fallthru
      _
    // Predicated region
    $region26: #{tpu_custom_call.1} parent=1 // pred_check
      _
    $region27: #{tpu_custom_call.1} parent=1 // pred_check_branch
      %35 = sbr.rel (0) target = $region29
    $region28: #{tpu_custom_call.1} parent=1 // pred_region
      _
    $region29: #{tpu_custom_call.1} parent=1 // pred_fallthru
      _
    // Predicated region
    $region30: #{tpu_custom_call.1} parent=1 // pred_check
      _
    $region31: #{tpu_custom_call.1} parent=1 // pred_check_branch
      %37 = sbr.rel (0) target = $region33
    $region32: #{tpu_custom_call.1} parent=1 // pred_region
      _
    $region33: #{tpu_custom_call.1} parent=1 // pred_fallthru
      _
    // Predicated region
    $region34: #{tpu_custom_call.1} parent=1 // pred_check
      _
    $region35: #{tpu_custom_call.1} parent=1 // pred_check_branch
      %39 = sbr.rel (0) target = $region37
    $region36: #{tpu_custom_call.1} parent=1 // pred_region
      _
    $region37: #{tpu_custom_call.1} parent=1 // pred_fallthru
      _
    // Predicated region
    $region38: #{tpu_custom_call.1} parent=1 // pred_check
      _
    $region39: #{tpu_custom_call.1} parent=1 // pred_check_branch
      %41 = sbr.rel (0) target = $region41
    $region40: #{tpu_custom_call.1} parent=1 // pred_region
      _
    $region41: #{tpu_custom_call.1} parent=1 // pred_fallthru
      _
    // Predicated region
    $region42: #{tpu_custom_call.1} parent=1 // pred_check
      _
    $region43: #{tpu_custom_call.1} parent=1 // pred_check_branch
      %43 = sbr.rel (0) target = $region45
    $region44: #{tpu_custom_call.1} parent=1 // pred_region
      _
    $region45: #{tpu_custom_call.1} parent=1 // pred_fallthru
      _
    // Predicated region
    $region46: #{tpu_custom_call.1} parent=1 // pred_check
      _
    $region47: #{tpu_custom_call.1} parent=1 // pred_check_branch
      %45 = sbr.rel (0) target = $region49
    $region48: #{tpu_custom_call.1} parent=1 // pred_region
      _
    $region49: #{tpu_custom_call.1} parent=1 // pred_fallthru
      _
    // Predicated region
    $region50: #{tpu_custom_call.1} parent=1 // pred_check
      _
    $region51: #{tpu_custom_call.1} parent=1 // pred_check_branch
      %47 = sbr.rel (0) target = $region53
    $region52: #{tpu_custom_call.1} parent=1 // pred_region
      _
    $region53: #{tpu_custom_call.1} parent=1 // pred_fallthru
      _
    // Predicated region
    $region54: #{tpu_custom_call.1} parent=1 // pred_check
      _
    $region55: #{tpu_custom_call.1} parent=1 // pred_check_branch
      %49 = sbr.rel (0) target = $region57
    $region56: #{tpu_custom_call.1} parent=1 // pred_region
      _
    $region57: #{tpu_custom_call.1} parent=1 // pred_fallthru
      _
    // Predicated region
    $region58: #{tpu_custom_call.1} parent=1 // pred_check
      _
    $region59: #{tpu_custom_call.1} parent=1 // pred_check_branch
      %51 = sbr.rel (0) target = $region61
    $region60: #{tpu_custom_call.1} parent=1 // pred_region
      _
    $region61: #{tpu_custom_call.1} parent=1 // pred_fallthru
      _
    // Predicated region
    $region62: #{tpu_custom_call.1} parent=1 // pred_check
      _
    $region63: #{tpu_custom_call.1} parent=1 // pred_check_branch
      %53 = sbr.rel (0) target = $region65
    $region64: #{tpu_custom_call.1} parent=1 // pred_region
      _
    $region65: #{tpu_custom_call.1} parent=1 // pred_fallthru
      _
    %v54 = vld [vmem:[%s0] sm:$0xff]
    %s55 = scalar_lea.vmem %s0, 8
    %v56 = vld [vmem:[%s55] sm:$0xff]
    %v58 = vcombine.high %v54, %v54
    %v61 = vcombine.high %v56, %v56
    %v63 = vld [vmem:[%s2] sm:$0xf]
    %v64 = vld [vmem:[%s3] sm:$0xf]
    %vm65 = vcmask 1043456
    %v66 = vsel %vm65, %v54, 0.0
    %v67 = vsel %vm65, %v58, 0.0
    %v68 = vadd.f32 %v66, %v67
    %v69 = vsel %vm65, %v56, 0.0
    %v70 = vadd.f32 %v68, %v69
    %v71 = vsel %vm65, %v61, 0.0
    %v72 = vadd.f32 %v70, %v71
    %73 = vadd.xlane.f32.xlu0 %v72
    %v74 = vpop.xlane.xlu0 %73
    %v75 = vmul.f32 %v74, 0.001953125
    %v76 = vsub.f32 %v54, %v75
    %v77 = vsub.f32 %v58, %v75
    %v78 = vsub.f32 %v56, %v75
    %v79 = vsub.f32 %v61, %v75
    %v80 = vmul.f32 %v76, %v76
    %v81 = vmul.f32 %v77, %v77
    %v82 = vmul.f32 %v78, %v78
    %v83 = vmul.f32 %v79, %v79
    %v84 = vsel %vm65, %v80, 0.0
    %v85 = vsel %vm65, %v81, 0.0
    %v86 = vadd.f32 %v84, %v85
    %v87 = vsel %vm65, %v82, 0.0
    %v88 = vadd.f32 %v86, %v87
    %v89 = vsel %vm65, %v83, 0.0
    %v90 = vadd.f32 %v88, %v89
    %91 = vadd.xlane.f32.xlu0 %v90
    %v92 = vpop.xlane.xlu0 %91
    %v93 = vmul.f32 %v92, 0.001953125
    %v94 = vadd.f32 %v93, 1e-05
    %v95 = vrsqrt.pop %v94
    %v96 = vmul.f32 %v76, %v95
    %v97 = vmul.f32 %v77, %v95
    %v98 = vmul.f32 %v78, %v95
    %v99 = vmul.f32 %v79, %v95
    %101 = vset.pattern.permute.xlu0 0
    %102 = vperm.xlu0 %101, %v63
    %v103 = vpop.permute.xlu0 %102
    %v105 = vmul.f32 %v96, %v103
    %v106 = vmul.f32 %v97, %v103
    %v107 = vmul.f32 %v98, %v103
    %v108 = vmul.f32 %v99, %v103
    %110 = vset.pattern.permute.xlu0 0
    %111 = vperm.xlu0 %110, %v64
    %v112 = vpop.permute.xlu0 %111
    %v114 = vadd.f32 %v105, %v112
    %v115 = vadd.f32 %v106, %v112
    %v116 = vadd.f32 %v107, %v112
    %v117 = vadd.f32 %v108, %v112
    %v118 = vld [vmem:[%s4] sm:$0xff]
    %v119 = vld [vmem:[%s4 + $0x8] sm:$0xff]
    %v120 = vld [vmem:[%s5] sm:$0xff]
    %v121 = vld [vmem:[%s5 + $0x8] sm:$0xff]
    %123 = vset.pattern.permute.xlu0 0
    %124 = vperm.xlu0 %123, %v118
    %v125 = vpop.permute.xlu0 %124
    %128 = vset.pattern.permute.xlu0 0
    %129 = vperm.xlu0 %128, %v119
    %v130 = vpop.permute.xlu0 %129
    %v132 = vlaneseq
    %v133 = vshrl.u32 %v132, 7
    %v134 = vsub.s32 0, %v133
    %v135 = vrot.slane %v114, %v134
    %v136 = vlaneseq
    %v137 = vshrl.u32 %v136, 7
    %v138 = vsub.s32 0, %v137
    %v139 = vrot.slane %v115, %v138
    %v140 = vlaneseq
    %v141 = vshrl.u32 %v140, 7
    %v142 = vsub.s32 0, %v141
    %v143 = vrot.slane %v116, %v142
    %v144 = vlaneseq
    %v145 = vshrl.u32 %v144, 7
    %v146 = vsub.s32 0, %v145
    %v147 = vrot.slane %v117, %v146
    %v148 = vmul.f32 %v125, %v135
    %v149 = vmul.f32 %v125, %v139
    %v150 = vmul.f32 %v125, %v143
    %v151 = vmul.f32 %v125, %v147
    %v152 = vmul.f32 %v130, %v135
    %v153 = vmul.f32 %v130, %v139
    %v154 = vmul.f32 %v130, %v143
    %v155 = vmul.f32 %v130, %v147
    %156 = vset.pattern.permute.xlu0 1
    %157 = vperm.xlu0 %156, %v118
    %v158 = vpop.permute.xlu0 %157
    %160 = vset.pattern.permute.xlu0 1
    %161 = vperm.xlu0 %160, %v119
    %v162 = vpop.permute.xlu0 %161
    %v164 = vlaneseq
    %v165 = vshrl.u32 %v164, 7
    %v166 = vsub.s32 1, %v165
    %v167 = vrot.slane %v114, %v166
    %v168 = vlaneseq
    %v169 = vshrl.u32 %v168, 7
    %v170 = vsub.s32 1, %v169
    %v171 = vrot.slane %v115, %v170
    %v172 = vlaneseq
    %v173 = vshrl.u32 %v172, 7
    %v174 = vsub.s32 1, %v173
    %v175 = vrot.slane %v116, %v174
    %v176 = vlaneseq
    %v177 = vshrl.u32 %v176, 7
    %v178 = vsub.s32 1, %v177
    %v179 = vrot.slane %v117, %v178
    %v180 = vmul.f32 %v158, %v167
    %v181 = vmul.f32 %v158, %v171
    %v182 = vmul.f32 %v158, %v175
    %v183 = vmul.f32 %v158, %v179
    %v184 = vmul.f32 %v162, %v167
    %v185 = vmul.f32 %v162, %v171
    %v186 = vmul.f32 %v162, %v175
    %v187 = vmul.f32 %v162, %v179
    %v188 = vadd.f32 %v148, %v180
    %v189 = vadd.f32 %v149, %v181
    %v190 = vadd.f32 %v150, %v182
    %v191 = vadd.f32 %v151, %v183
    %v192 = vadd.f32 %v152, %v184
    %v193 = vadd.f32 %v153, %v185
    %v194 = vadd.f32 %v154, %v186
    %v195 = vadd.f32 %v155, %v187
    %196 = vset.pattern.permute.xlu0 2
    %197 = vperm.xlu0 %196, %v118
    %v198 = vpop.permute.xlu0 %197
    %200 = vset.pattern.permute.xlu0 2
    %201 = vperm.xlu0 %200, %v119
    %v202 = vpop.permute.xlu0 %201
    %v204 = vlaneseq
    %v205 = vshrl.u32 %v204, 7
    %v206 = vsub.s32 2, %v205
    %v207 = vrot.slane %v114, %v206
    %v208 = vlaneseq
    %v209 = vshrl.u32 %v208, 7
    %v210 = vsub.s32 2, %v209
    %v211 = vrot.slane %v115, %v210
    %v212 = vlaneseq
    %v213 = vshrl.u32 %v212, 7
    %v214 = vsub.s32 2, %v213
    %v215 = vrot.slane %v116, %v214
    %v216 = vlaneseq
    %v217 = vshrl.u32 %v216, 7
    %v218 = vsub.s32 2, %v217
    %v219 = vrot.slane %v117, %v218
    %v220 = vmul.f32 %v198, %v207
    %v221 = vmul.f32 %v198, %v211
    %v222 = vmul.f32 %v198, %v215
    %v223 = vmul.f32 %v198, %v219
    %v224 = vmul.f32 %v202, %v207
    %v225 = vmul.f32 %v202, %v211
    %v226 = vmul.f32 %v202, %v215
    %v227 = vmul.f32 %v202, %v219
    %v228 = vadd.f32 %v188, %v220
    %v229 = vadd.f32 %v189, %v221
    %v230 = vadd.f32 %v190, %v222
    %v231 = vadd.f32 %v191, %v223
    %v232 = vadd.f32 %v192, %v224
    %v233 = vadd.f32 %v193, %v225
    %v234 = vadd.f32 %v194, %v226
    %v235 = vadd.f32 %v195, %v227
    %236 = vset.pattern.permute.xlu0 3
    %237 = vperm.xlu0 %236, %v118
    %v238 = vpop.permute.xlu0 %237
    %240 = vset.pattern.permute.xlu0 3
    %241 = vperm.xlu0 %240, %v119
    %v242 = vpop.permute.xlu0 %241
    %v244 = vlaneseq
    %v245 = vshrl.u32 %v244, 7
    %v246 = vsub.s32 3, %v245
    %v247 = vrot.slane %v114, %v246
    %v248 = vlaneseq
    %v249 = vshrl.u32 %v248, 7
    %v250 = vsub.s32 3, %v249
    %v251 = vrot.slane %v115, %v250
    %v252 = vlaneseq
    %v253 = vshrl.u32 %v252, 7
    %v254 = vsub.s32 3, %v253
    %v255 = vrot.slane %v116, %v254
    %v256 = vlaneseq
    %v257 = vshrl.u32 %v256, 7
    %v258 = vsub.s32 3, %v257
    %v259 = vrot.slane %v117, %v258
    %v260 = vmul.f32 %v238, %v247
    %v261 = vmul.f32 %v238, %v251
    %v262 = vmul.f32 %v238, %v255
    %v263 = vmul.f32 %v238, %v259
    %v264 = vmul.f32 %v242, %v247
    %v265 = vmul.f32 %v242, %v251
    %v266 = vmul.f32 %v242, %v255
    %v267 = vmul.f32 %v242, %v259
    %v268 = vadd.f32 %v228, %v260
    %v269 = vadd.f32 %v229, %v261
    %v270 = vadd.f32 %v230, %v262
    %v271 = vadd.f32 %v231, %v263
    %v272 = vadd.f32 %v232, %v264
    %v273 = vadd.f32 %v233, %v265
    %v274 = vadd.f32 %v234, %v266
    %v275 = vadd.f32 %v235, %v267
    %277 = vset.pattern.permute.xlu0 0
    %278 = vperm.xlu0 %277, %v120
    %v279 = vpop.permute.xlu0 %278
    %282 = vset.pattern.permute.xlu0 0
    %283 = vperm.xlu0 %282, %v121
    %v284 = vpop.permute.xlu0 %283
    %v286 = vadd.f32 %v268, %v279
    %v287 = vadd.f32 %v269, %v279
    %v288 = vadd.f32 %v270, %v279
    %v289 = vadd.f32 %v271, %v279
    %v290 = vadd.f32 %v272, %v284
    %v291 = vadd.f32 %v273, %v284
    %v292 = vadd.f32 %v274, %v284
    %v293 = vadd.f32 %v275, %v284
    %v294 = vld [vmem:[%s1] sm:$0x3f]
    %v295 = vld [vmem:[%s1 + $0x8] sm:$0x3f]
    %v296 = vld [vmem:[%s1 + $0x10] sm:$0x3f]
    %v297 = vld [vmem:[%s1 + $0x18] sm:$0x3f]
    %v298 = vld [vmem:[%s6] sm:$0xff]
    %v299 = vlaneseq
    %v300 = vshrl.u32 %v299, 7
    %v301 = vsub.s32 0, %v300
    %v302 = vrot.slane %v294, %v301
    %v303 = vlaneseq
    %v304 = vshrl.u32 %v303, 7
    %v305 = vsub.s32 0, %v304
    %v306 = vrot.slane %v295, %v305
    %v307 = vlaneseq
    %v308 = vshrl.u32 %v307, 7
    %v309 = vsub.s32 0, %v308
    %v310 = vrot.slane %v296, %v309
    %v311 = vlaneseq
    %v312 = vshrl.u32 %v311, 7
    %v313 = vsub.s32 0, %v312
    %v314 = vrot.slane %v297, %v313
    %v315 = vmul.f32 %v286, %v302
    %v316 = vmul.f32 %v287, %v306
    %v317 = vmul.f32 %v288, %v310
    %v318 = vmul.f32 %v289, %v314
    %v319 = vlaneseq
    %v320 = vshrl.u32 %v319, 7
    %v321 = vsub.s32 1, %v320
    %v322 = vrot.slane %v294, %v321
    %v323 = vlaneseq
    %v324 = vshrl.u32 %v323, 7
    %v325 = vsub.s32 1, %v324
    %v326 = vrot.slane %v295, %v325
    %v327 = vlaneseq
    %v328 = vshrl.u32 %v327, 7
    %v329 = vsub.s32 1, %v328
    %v330 = vrot.slane %v296, %v329
    %v331 = vlaneseq
    %v332 = vshrl.u32 %v331, 7
    %v333 = vsub.s32 1, %v332
    %v334 = vrot.slane %v297, %v333
    %v335 = vmul.f32 %v286, %v322
    %v336 = vmul.f32 %v287, %v326
    %v337 = vmul.f32 %v288, %v330
    %v338 = vmul.f32 %v289, %v334
    %339 = vrot.lane.b32.xlu0 %v315, 1
    %v340 = vpop.permute.xlu0 %339
    %341 = vrot.lane.b32.xlu0 %v316, 1
    %v342 = vpop.permute.xlu0 %341
    %343 = vrot.lane.b32.xlu0 %v317, 1
    %v344 = vpop.permute.xlu0 %343
    %345 = vrot.lane.b32.xlu0 %v318, 1
    %v346 = vpop.permute.xlu0 %345
    %v347 = vlaneseq
    %v348 = vand.u32 %v347, 127
    %vm349 = vcmp.lt.s32.totalorder %v348, 1
    %v350 = vsel %vm349, %v344, %v346
    %v351 = vsel %vm349, %v342, %v344
    %v352 = vsel %vm349, %v340, %v342
    %v353 = vsel %vm349, %v346, %v340
    %355 = vset.pattern.permute.xlu0 3
    %356 = vperm.xlu0 %355, %v298
    %v357 = vpop.permute.xlu0 %356
    %v359 = vmul.f32 %v353, %v357
    %v360 = vmul.f32 %v352, %v357
    %v361 = vmul.f32 %v351, %v357
    %v362 = vmul.f32 %v350, %v357
    %363 = vset.pattern.permute.xlu0 4
    %364 = vperm.xlu0 %363, %v298
    %v365 = vpop.permute.xlu0 %364
    %v367 = vmul.f32 %v286, %v365
    %v368 = vmul.f32 %v287, %v365
    %v369 = vmul.f32 %v288, %v365
    %v370 = vmul.f32 %v289, %v365
    %v371 = vadd.f32 %v359, %v367
    %v372 = vadd.f32 %v360, %v368
    %v373 = vadd.f32 %v361, %v369
    %v374 = vadd.f32 %v362, %v370
    %375 = vrot.lane.b32.xlu0 %v335, 127
    %v376 = vpop.permute.xlu0 %375
    %377 = vrot.lane.b32.xlu0 %v336, 127
    %v378 = vpop.permute.xlu0 %377
    %379 = vrot.lane.b32.xlu0 %v337, 127
    %v380 = vpop.permute.xlu0 %379
    %381 = vrot.lane.b32.xlu0 %v338, 127
    %v382 = vpop.permute.xlu0 %381
    %vm383 = vcmp.lt.s32.totalorder %v348, 127
    %v384 = vsel %vm383, %v380, %v382
    %v385 = vsel %vm383, %v378, %v380
    %v386 = vsel %vm383, %v376, %v378
    %v387 = vsel %vm383, %v382, %v376
    %388 = vset.pattern.permute.xlu0 5
    %389 = vperm.xlu0 %388, %v298
    %v390 = vpop.permute.xlu0 %389
    %v392 = vmul.f32 %v386, %v390
    %v393 = vmul.f32 %v385, %v390
    %v394 = vmul.f32 %v384, %v390
    %v395 = vmul.f32 %v387, %v390
    %v396 = vadd.f32 %v371, %v392
    %v397 = vadd.f32 %v372, %v393
    %v398 = vadd.f32 %v373, %v394
    %v399 = vadd.f32 %v374, %v395
    %400 = vrot.lane.b32.xlu0 %v315, 17
    %v401 = vpop.permute.xlu0 %400
    %402 = vrot.lane.b32.xlu0 %v316, 17
    %v403 = vpop.permute.xlu0 %402
    %404 = vrot.lane.b32.xlu0 %v317, 17
    %v405 = vpop.permute.xlu0 %404
    %406 = vrot.lane.b32.xlu0 %v318, 17
    %v407 = vpop.permute.xlu0 %406
    %vm408 = vcmp.lt.s32.totalorder %v348, 17
    %v409 = vsel %vm408, %v405, %v407
    %v410 = vsel %vm408, %v403, %v405
    %v411 = vsel %vm408, %v401, %v403
    %v412 = vsel %vm408, %v407, %v401
    %413 = vset.pattern.permute.xlu0 0
    %414 = vperm.xlu0 %413, %v298
    %v415 = vpop.permute.xlu0 %414
    %v417 = vmul.f32 %v412, %v415
    %v418 = vmul.f32 %v411, %v415
    %v419 = vmul.f32 %v410, %v415
    %v420 = vmul.f32 %v409, %v415
    %421 = vrot.lane.b32.xlu0 %v286, 16
    %v422 = vpop.permute.xlu0 %421
    %423 = vrot.lane.b32.xlu0 %v287, 16
    %v424 = vpop.permute.xlu0 %423
    %425 = vrot.lane.b32.xlu0 %v288, 16
    %v426 = vpop.permute.xlu0 %425
    %427 = vrot.lane.b32.xlu0 %v289, 16
    %v428 = vpop.permute.xlu0 %427
    %vm429 = vcmp.lt.s32.totalorder %v348, 16
    %v430 = vsel %vm429, %v426, %v428
    %v431 = vsel %vm429, %v424, %v426
    %v432 = vsel %vm429, %v422, %v424
    %v433 = vsel %vm429, %v428, %v422
    %434 = vset.pattern.permute.xlu0 1
    %435 = vperm.xlu0 %434, %v298
    %v436 = vpop.permute.xlu0 %435
    %v438 = vmul.f32 %v433, %v436
    %v439 = vmul.f32 %v432, %v436
    %v440 = vmul.f32 %v431, %v436
    %v441 = vmul.f32 %v430, %v436
    %v442 = vadd.f32 %v417, %v438
    %v443 = vadd.f32 %v418, %v439
    %v444 = vadd.f32 %v419, %v440
    %v445 = vadd.f32 %v420, %v441
    %446 = vrot.lane.b32.xlu0 %v335, 15
    %v447 = vpop.permute.xlu0 %446
    %448 = vrot.lane.b32.xlu0 %v336, 15
    %v449 = vpop.permute.xlu0 %448
    %450 = vrot.lane.b32.xlu0 %v337, 15
    %v451 = vpop.permute.xlu0 %450
    %452 = vrot.lane.b32.xlu0 %v338, 15
    %v453 = vpop.permute.xlu0 %452
    %vm454 = vcmp.lt.s32.totalorder %v348, 15
    %v455 = vsel %vm454, %v451, %v453
    %v456 = vsel %vm454, %v449, %v451
    %v457 = vsel %vm454, %v447, %v449
    %v458 = vsel %vm454, %v453, %v447
    %459 = vset.pattern.permute.xlu0 2
    %460 = vperm.xlu0 %459, %v298
    %v461 = vpop.permute.xlu0 %460
    %v463 = vmul.f32 %v458, %v461
    %v464 = vmul.f32 %v457, %v461
    %v465 = vmul.f32 %v456, %v461
    %v466 = vmul.f32 %v455, %v461
    %v467 = vadd.f32 %v442, %v463
    %v468 = vadd.f32 %v443, %v464
    %v469 = vadd.f32 %v444, %v465
    %v470 = vadd.f32 %v445, %v466
    %v471 = vlaneseq
    %v472 = vshrl.u32 %v471, 7
    %v473 = vsub.s32 2, %v472
    %v474 = vrot.slane %v294, %v473
    %v475 = vlaneseq
    %v476 = vshrl.u32 %v475, 7
    %v477 = vsub.s32 2, %v476
    %v478 = vrot.slane %v295, %v477
    %v479 = vlaneseq
    %v480 = vshrl.u32 %v479, 7
    %v481 = vsub.s32 2, %v480
    %v482 = vrot.slane %v296, %v481
    %v483 = vlaneseq
    %v484 = vshrl.u32 %v483, 7
    %v485 = vsub.s32 2, %v484
    %v486 = vrot.slane %v297, %v485
    %v487 = vmul.f32 %v467, %v474
    %v488 = vmul.f32 %v468, %v478
    %v489 = vmul.f32 %v469, %v482
    %v490 = vmul.f32 %v470, %v486
    %v491 = vadd.f32 %v396, %v487
    %v492 = vadd.f32 %v397, %v488
    %v493 = vadd.f32 %v398, %v489
    %v494 = vadd.f32 %v399, %v490
    %495 = vrot.lane.b32.xlu0 %v315, 113
    %v496 = vpop.permute.xlu0 %495
    %497 = vrot.lane.b32.xlu0 %v316, 113
    %v498 = vpop.permute.xlu0 %497
    %499 = vrot.lane.b32.xlu0 %v317, 113
    %v500 = vpop.permute.xlu0 %499
    %501 = vrot.lane.b32.xlu0 %v318, 113
    %v502 = vpop.permute.xlu0 %501
    %vm503 = vcmp.lt.s32.totalorder %v348, 113
    %v504 = vsel %vm503, %v500, %v502
    %v505 = vsel %vm503, %v498, %v500
    %v506 = vsel %vm503, %v496, %v498
    %v507 = vsel %vm503, %v502, %v496
    %508 = vset.pattern.permute.xlu0 6
    %509 = vperm.xlu0 %508, %v298
    %v510 = vpop.permute.xlu0 %509
    %v512 = vmul.f32 %v506, %v510
    %v513 = vmul.f32 %v505, %v510
    %v514 = vmul.f32 %v504, %v510
    %v515 = vmul.f32 %v507, %v510
    %516 = vrot.lane.b32.xlu0 %v286, 112
    %v517 = vpop.permute.xlu0 %516
    %518 = vrot.lane.b32.xlu0 %v287, 112
    %v519 = vpop.permute.xlu0 %518
    %520 = vrot.lane.b32.xlu0 %v288, 112
    %v521 = vpop.permute.xlu0 %520
    %522 = vrot.lane.b32.xlu0 %v289, 112
    %v523 = vpop.permute.xlu0 %522
    %vm524 = vcmp.lt.s32.totalorder %v348, 112
    %v525 = vsel %vm524, %v521, %v523
    %v526 = vsel %vm524, %v519, %v521
    %v527 = vsel %vm524, %v517, %v519
    %v528 = vsel %vm524, %v523, %v517
    %529 = vset.pattern.permute.xlu0 7
    %530 = vperm.xlu0 %529, %v298
    %v531 = vpop.permute.xlu0 %530
    %v533 = vmul.f32 %v527, %v531
    %v534 = vmul.f32 %v526, %v531
    %v535 = vmul.f32 %v525, %v531
    %v536 = vmul.f32 %v528, %v531
    %v537 = vadd.f32 %v512, %v533
    %v538 = vadd.f32 %v513, %v534
    %v539 = vadd.f32 %v514, %v535
    %v540 = vadd.f32 %v515, %v536
    %541 = vrot.lane.b32.xlu0 %v335, 111
    %v542 = vpop.permute.xlu0 %541
    %543 = vrot.lane.b32.xlu0 %v336, 111
    %v544 = vpop.permute.xlu0 %543
    %545 = vrot.lane.b32.xlu0 %v337, 111
    %v546 = vpop.permute.xlu0 %545
    %547 = vrot.lane.b32.xlu0 %v338, 111
    %v548 = vpop.permute.xlu0 %547
    %vm549 = vcmp.lt.s32.totalorder %v348, 111
    %v550 = vsel %vm549, %v546, %v548
    %v551 = vsel %vm549, %v544, %v546
    %v552 = vsel %vm549, %v542, %v544
    %v553 = vsel %vm549, %v548, %v542
    %554 = vset.pattern.permute.xlu0 8
    %555 = vperm.xlu0 %554, %v298
    %v556 = vpop.permute.xlu0 %555
    %v558 = vmul.f32 %v552, %v556
    %v559 = vmul.f32 %v551, %v556
    %v560 = vmul.f32 %v550, %v556
    %v561 = vmul.f32 %v553, %v556
    %v562 = vadd.f32 %v537, %v558
    %v563 = vadd.f32 %v538, %v559
    %v564 = vadd.f32 %v539, %v560
    %v565 = vadd.f32 %v540, %v561
    %v566 = vlaneseq
    %v567 = vshrl.u32 %v566, 7
    %v568 = vsub.s32 3, %v567
    %v569 = vrot.slane %v294, %v568
    %v570 = vlaneseq
    %v571 = vshrl.u32 %v570, 7
    %v572 = vsub.s32 3, %v571
    %v573 = vrot.slane %v295, %v572
    %v574 = vlaneseq
    %v575 = vshrl.u32 %v574, 7
    %v576 = vsub.s32 3, %v575
    %v577 = vrot.slane %v296, %v576
    %v578 = vlaneseq
    %v579 = vshrl.u32 %v578, 7
    %v580 = vsub.s32 3, %v579
    %v581 = vrot.slane %v297, %v580
    %v582 = vmul.f32 %v562, %v569
    %v583 = vmul.f32 %v563, %v573
    %v584 = vmul.f32 %v564, %v577
    %v585 = vmul.f32 %v565, %v581
    %v586 = vadd.f32 %v491, %v582
    %v587 = vadd.f32 %v492, %v583
    %v588 = vadd.f32 %v493, %v584
    %v589 = vadd.f32 %v494, %v585
    %v590 = vld [vmem:[%s7] sm:$0xff]
    %592 = vset.pattern.permute.xlu0 0
    %593 = vperm.xlu0 %592, %v590
    %v594 = vpop.permute.xlu0 %593
    %v596 = vadd.f32 %v586, %v594
    %v597 = vadd.f32 %v587, %v594
    %v598 = vadd.f32 %v588, %v594
    %v599 = vadd.f32 %v589, %v594
    %v600 = vmul.f32 %v596, 0.5
    %v601 = vmul.f32 %v597, 0.5
    %v602 = vmul.f32 %v598, 0.5
    %v603 = vmul.f32 %v599, 0.5
    %v604 = vmul.f32 %v596, 0.70710677
    %v605 = vmul.f32 %v597, 0.70710677
    %v606 = vmul.f32 %v598, 0.70710677
    %v607 = vmul.f32 %v599, 0.70710677
    %vm608 = vcmp.lt.f32.partialorder %v604, 0.0
    %vm609 = vcmp.lt.f32.partialorder %v605, 0.0
    %vm610 = vcmp.lt.f32.partialorder %v606, 0.0
    %vm611 = vcmp.lt.f32.partialorder %v607, 0.0
    %v612 = vsel %vm608, -1.0, 1.0
    %v613 = vsel %vm609, -1.0, 1.0
    %v614 = vsel %vm610, -1.0, 1.0
    %v615 = vsel %vm611, -1.0, 1.0
    %v616 = vand.u32 2147483647, %v604
    %v617 = vand.u32 2147483647, %v605
    %v618 = vand.u32 2147483647, %v606
    %v619 = vand.u32 2147483647, %v607
    %v620 = vmul.f32 %v616, 0.3275911
    %v621 = vmul.f32 %v617, 0.3275911
    %v622 = vmul.f32 %v618, 0.3275911
    %v623 = vmul.f32 %v619, 0.3275911
    %v624 = vadd.f32 %v620, 1.0
    %v625 = vadd.f32 %v621, 1.0
    %v626 = vadd.f32 %v622, 1.0
    %v627 = vadd.f32 %v623, 1.0
    %v628 = vrcp.pop %v624
    %v629 = vrcp.pop %v625
    %v630 = vrcp.pop %v626
    %v631 = vrcp.pop %v627
    %v632 = vmul.f32 %v624, %v628
    %v633 = vmul.f32 %v625, %v629
    %v634 = vmul.f32 %v626, %v630
    %v635 = vmul.f32 %v627, %v631
    %v636 = vsub.f32 2.0, %v632
    %v637 = vsub.f32 2.0, %v633
    %v638 = vsub.f32 2.0, %v634
    %v639 = vsub.f32 2.0, %v635
    %v640 = vmul.f32 %v628, %v636
    %v641 = vmul.f32 %v629, %v637
    %v642 = vmul.f32 %v630, %v638
    %v643 = vmul.f32 %v631, %v639
    %v644 = vmul.f32 %v640, 1.0614054
    %v645 = vmul.f32 %v641, 1.0614054
    %v646 = vmul.f32 %v642, 1.0614054
    %v647 = vmul.f32 %v643, 1.0614054
    %v648 = vadd.f32 %v644, -1.4531521
    %v649 = vadd.f32 %v645, -1.4531521
    %v650 = vadd.f32 %v646, -1.4531521
    %v651 = vadd.f32 %v647, -1.4531521
    %v652 = vmul.f32 %v648, %v640
    %v653 = vmul.f32 %v649, %v641
    %v654 = vmul.f32 %v650, %v642
    %v655 = vmul.f32 %v651, %v643
    %v656 = vadd.f32 %v652, 1.4214138
    %v657 = vadd.f32 %v653, 1.4214138
    %v658 = vadd.f32 %v654, 1.4214138
    %v659 = vadd.f32 %v655, 1.4214138
    %v660 = vmul.f32 %v656, %v640
    %v661 = vmul.f32 %v657, %v641
    %v662 = vmul.f32 %v658, %v642
    %v663 = vmul.f32 %v659, %v643
    %v664 = vadd.f32 %v660, -0.28449672
    %v665 = vadd.f32 %v661, -0.28449672
    %v666 = vadd.f32 %v662, -0.28449672
    %v667 = vadd.f32 %v663, -0.28449672
    %v668 = vmul.f32 %v664, %v640
    %v669 = vmul.f32 %v665, %v641
    %v670 = vmul.f32 %v666, %v642
    %v671 = vmul.f32 %v667, %v643
    %v672 = vadd.f32 %v668, 0.2548296
    %v673 = vadd.f32 %v669, 0.2548296
    %v674 = vadd.f32 %v670, 0.2548296
    %v675 = vadd.f32 %v671, 0.2548296
    %v676 = vmul.f32 %v672, %v640
    %v677 = vmul.f32 %v673, %v641
    %v678 = vmul.f32 %v674, %v642
    %v679 = vmul.f32 %v675, %v643
    %v680 = vsub.f32 0.0, %v616
    %v681 = vsub.f32 0.0, %v617
    %v682 = vsub.f32 0.0, %v618
    %v683 = vsub.f32 0.0, %v619
    %v684 = vmul.f32 %v680, %v616
    %v685 = vmul.f32 %v681, %v617
    %v686 = vmul.f32 %v682, %v618
    %v687 = vmul.f32 %v683, %v619
    %v688 = vmul.f32 %v684, 1.442695
    %v689 = vpow.pop %v688
    %v690 = vmul.f32 %v685, 1.442695
    %v691 = vpow.pop %v690
    %v692 = vmul.f32 %v686, 1.442695
    %v693 = vpow.pop %v692
    %v694 = vmul.f32 %v687, 1.442695
    %v695 = vpow.pop %v694
    %v696 = vmul.f32 %v676, %v689
    %v697 = vmul.f32 %v677, %v691
    %v698 = vmul.f32 %v678, %v693
    %v699 = vmul.f32 %v679, %v695
    %v700 = vsub.f32 1.0, %v696
    %v701 = vsub.f32 1.0, %v697
    %v702 = vsub.f32 1.0, %v698
    %v703 = vsub.f32 1.0, %v699
    %v704 = vmul.f32 %v612, %v700
    %v705 = vmul.f32 %v613, %v701
    %v706 = vmul.f32 %v614, %v702
    %v707 = vmul.f32 %v615, %v703
    %v708 = vadd.f32 %v704, 1.0
    %v709 = vadd.f32 %v705, 1.0
    %v710 = vadd.f32 %v706, 1.0
    %v711 = vadd.f32 %v707, 1.0
    %v712 = vmul.f32 %v600, %v708
    %v713 = vmul.f32 %v601, %v709
    %v714 = vmul.f32 %v602, %v710
    %v715 = vmul.f32 %v603, %v711
    %v716 = vadd.f32 %v712, %v713
    %717 = vadd.xlane.f32.xlu0 %v716
    %v718 = vpop.xlane.xlu0 %717
    %v719 = vmul.f32 %v718, 0.00390625
    %v720 = vadd.f32 %v714, %v715
    %721 = vadd.xlane.f32.xlu0 %v720
    %v722 = vpop.xlane.xlu0 %721
    %v723 = vmul.f32 %v722, 0.00390625
    %vm724 = vcmask 7168
    %v725 = vsel %vm724, %v719, %v723
    %v726 = vld [vmem:[%s8] sm:$0x3]
    %v727 = vld [vmem:[%s9] sm:$0x3]
    %729 = vset.pattern.permute.xlu0 0
    %730 = vperm.xlu0 %729, %v726
    %v731 = vpop.permute.xlu0 %730
    %v733 = vlaneseq
    %v734 = vshrl.u32 %v733, 7
    %v735 = vsub.s32 0, %v734
    %v736 = vrot.slane %v725, %v735
    %v737 = vmul.f32 %v731, %v736
    %738 = vset.pattern.permute.xlu0 1
    %739 = vperm.xlu0 %738, %v726
    %v740 = vpop.permute.xlu0 %739
    %v742 = vlaneseq
    %v743 = vshrl.u32 %v742, 7
    %v744 = vsub.s32 1, %v743
    %v745 = vrot.slane %v725, %v744
    %v746 = vmul.f32 %v740, %v745
    %v747 = vadd.f32 %v737, %v746
    %748 = vset.pattern.permute.xlu0 2
    %749 = vperm.xlu0 %748, %v726
    %v750 = vpop.permute.xlu0 %749
    %v752 = vlaneseq
    %v753 = vshrl.u32 %v752, 7
    %v754 = vsub.s32 2, %v753
    %v755 = vrot.slane %v725, %v754
    %v756 = vmul.f32 %v750, %v755
    %v757 = vadd.f32 %v747, %v756
    %758 = vset.pattern.permute.xlu0 3
    %759 = vperm.xlu0 %758, %v726
    %v760 = vpop.permute.xlu0 %759
    %v762 = vlaneseq
    %v763 = vshrl.u32 %v762, 7
    %v764 = vsub.s32 3, %v763
    %v765 = vrot.slane %v725, %v764
    %v766 = vmul.f32 %v760, %v765
    %v767 = vadd.f32 %v757, %v766
    %768 = vset.pattern.permute.xlu0 4
    %769 = vperm.xlu0 %768, %v726
    %v770 = vpop.permute.xlu0 %769
    %v772 = vlaneseq
    %v773 = vshrl.u32 %v772, 7
    %v774 = vsub.s32 4, %v773
    %v775 = vrot.slane %v725, %v774
    %v776 = vmul.f32 %v770, %v775
    %v777 = vadd.f32 %v767, %v776
    %778 = vset.pattern.permute.xlu0 5
    %779 = vperm.xlu0 %778, %v726
    %v780 = vpop.permute.xlu0 %779
    %v782 = vlaneseq
    %v783 = vshrl.u32 %v782, 7
    %v784 = vsub.s32 5, %v783
    %v785 = vrot.slane %v725, %v784
    %v786 = vmul.f32 %v780, %v785
    %v787 = vadd.f32 %v777, %v786
    %788 = vset.pattern.permute.xlu0 6
    %789 = vperm.xlu0 %788, %v726
    %v790 = vpop.permute.xlu0 %789
    %v792 = vlaneseq
    %v793 = vshrl.u32 %v792, 7
    %v794 = vsub.s32 6, %v793
    %v795 = vrot.slane %v725, %v794
    %v796 = vmul.f32 %v790, %v795
    %v797 = vadd.f32 %v787, %v796
    %798 = vset.pattern.permute.xlu0 7
    %799 = vperm.xlu0 %798, %v726
    %v800 = vpop.permute.xlu0 %799
    %v802 = vlaneseq
    %v803 = vshrl.u32 %v802, 7
    %v804 = vsub.s32 7, %v803
    %v805 = vrot.slane %v725, %v804
    %v806 = vmul.f32 %v800, %v805
    %v807 = vadd.f32 %v797, %v806
    %809 = vset.pattern.permute.xlu0 0
    %810 = vperm.xlu0 %809, %v727
    %v811 = vpop.permute.xlu0 %810
    %v813 = vadd.f32 %v807, %v811
    %v814 = vmax.f32 %v813, 0.0
    %v815 = vld [vmem:[%s10] sm:$0xff]
    %v816 = vld [vmem:[%s11] sm:$0xff]
    %818 = vset.pattern.permute.xlu0 0
    %819 = vperm.xlu0 %818, %v815
    %v820 = vpop.permute.xlu0 %819
    %v822 = vlaneseq
    %v823 = vshrl.u32 %v822, 7
    %v824 = vsub.s32 0, %v823
    %v825 = vrot.slane %v814, %v824
    %v826 = vmul.f32 %v820, %v825
    %827 = vset.pattern.permute.xlu0 1
    %828 = vperm.xlu0 %827, %v815
    %v829 = vpop.permute.xlu0 %828
    %v831 = vlaneseq
    %v832 = vshrl.u32 %v831, 7
    %v833 = vsub.s32 1, %v832
    %v834 = vrot.slane %v814, %v833
    %v835 = vmul.f32 %v829, %v834
    %v836 = vadd.f32 %v826, %v835
    %838 = vset.pattern.permute.xlu0 0
    %839 = vperm.xlu0 %838, %v816
    %v840 = vpop.permute.xlu0 %839
    %v842 = vadd.f32 %v836, %v840
    %v843 = vand.u32 2147483647, %v842
    %v844 = vsub.f32 0.0, %v843
    %v845 = vmul.f32 %v844, 1.442695
    %v846 = vpow.pop %v845
    %v847 = vadd.f32 %v846, 1.0
    %v848 = vrcp.pop %v847
    %v849 = vmul.f32 %v847, %v848
    %v850 = vsub.f32 2.0, %v849
    %v851 = vmul.f32 %v848, %v850
    %vm852 = vcmp.ge.f32.partialorder %v842, 0.0
    %v853 = vmul.f32 %v846, %v851
    %v854 = vsel %vm852, %v851, %v853
    %856 = vset.pattern.permute.xlu0 0
    %857 = vperm.xlu0 %856, %v854
    %v858 = vpop.permute.xlu0 %857
    %v860 = vlaneseq
    %v861 = vshrl.u32 %v860, 7
    %v862 = vsub.s32 4, %v861
    %v863 = vrot.slane %v294, %v862
    %v864 = vlaneseq
    %v865 = vshrl.u32 %v864, 7
    %v866 = vsub.s32 4, %v865
    %v867 = vrot.slane %v295, %v866
    %v868 = vlaneseq
    %v869 = vshrl.u32 %v868, 7
    %v870 = vsub.s32 4, %v869
    %v871 = vrot.slane %v296, %v870
    %v872 = vlaneseq
    %v873 = vshrl.u32 %v872, 7
    %v874 = vsub.s32 4, %v873
    %v875 = vrot.slane %v297, %v874
    %v876 = vmul.f32 %v858, %v863
    %v877 = vmul.f32 %v858, %v867
    %v878 = vmul.f32 %v858, %v871
    %v879 = vmul.f32 %v858, %v875
    %880 = vset.pattern.permute.xlu0 1
    %881 = vperm.xlu0 %880, %v854
    %v882 = vpop.permute.xlu0 %881
    %v884 = vlaneseq
    %v885 = vshrl.u32 %v884, 7
    %v886 = vsub.s32 5, %v885
    %v887 = vrot.slane %v294, %v886
    %v888 = vlaneseq
    %v889 = vshrl.u32 %v888, 7
    %v890 = vsub.s32 5, %v889
    %v891 = vrot.slane %v295, %v890
    %v892 = vlaneseq
    %v893 = vshrl.u32 %v892, 7
    %v894 = vsub.s32 5, %v893
    %v895 = vrot.slane %v296, %v894
    %v896 = vlaneseq
    %v897 = vshrl.u32 %v896, 7
    %v898 = vsub.s32 5, %v897
    %v899 = vrot.slane %v297, %v898
    %v900 = vmul.f32 %v882, %v887
    %v901 = vmul.f32 %v882, %v891
    %v902 = vmul.f32 %v882, %v895
    %v903 = vmul.f32 %v882, %v899
    %v904 = vadd.f32 %v876, %v900
    %v905 = vadd.f32 %v877, %v901
    %v906 = vadd.f32 %v878, %v902
    %v907 = vadd.f32 %v879, %v903
    %v908 = vmul.f32 %v712, %v904
    %v909 = vmul.f32 %v713, %v905
    %v910 = vmul.f32 %v714, %v906
    %v911 = vmul.f32 %v715, %v907
    %v912 = vld [vmem:[%s12] sm:$0xff]
    %v913 = vld [vmem:[%s13] sm:$0xff]
    %v914 = vadd.f32 %v908, %v909
    %v915 = vadd.f32 %v914, %v910
    %v916 = vadd.f32 %v915, %v911
    %917 = vadd.xlane.f32.xlu0 %v916
    %v918 = vpop.xlane.xlu0 %917
    %v919 = vmul.f32 %v918, 0.001953125
    %v920 = vsub.f32 %v908, %v919
    %v921 = vsub.f32 %v909, %v919
    %v922 = vsub.f32 %v910, %v919
    %v923 = vsub.f32 %v911, %v919
    %v924 = vmul.f32 %v920, %v920
    %v925 = vmul.f32 %v921, %v921
    %v926 = vmul.f32 %v922, %v922
    %v927 = vmul.f32 %v923, %v923
    %v928 = vadd.f32 %v924, %v925
    %v929 = vadd.f32 %v928, %v926
    %v930 = vadd.f32 %v929, %v927
    %931 = vadd.xlane.f32.xlu0 %v930
    %v932 = vpop.xlane.xlu0 %931
    %v933 = vmul.f32 %v932, 0.001953125
    %v934 = vadd.f32 %v933, 1e-05
    %v935 = vrsqrt.pop %v934
    %v936 = vmul.f32 %v920, %v935
    %v937 = vmul.f32 %v921, %v935
    %v938 = vmul.f32 %v922, %v935
    %v939 = vmul.f32 %v923, %v935
    %941 = vset.pattern.permute.xlu0 0
    %942 = vperm.xlu0 %941, %v912
    %v943 = vpop.permute.xlu0 %942
    %v945 = vmul.f32 %v936, %v943
    %v946 = vmul.f32 %v937, %v943
    %v947 = vmul.f32 %v938, %v943
    %v948 = vmul.f32 %v939, %v943
    %950 = vset.pattern.permute.xlu0 0
    %951 = vperm.xlu0 %950, %v913
    %v952 = vpop.permute.xlu0 %951
    %v954 = vadd.f32 %v945, %v952
    %v955 = vadd.f32 %v946, %v952
    %v956 = vadd.f32 %v947, %v952
    %v957 = vadd.f32 %v948, %v952
    %v958 = vmul.f32 %v290, 0.5
    %v959 = vmul.f32 %v291, 0.5
    %v960 = vmul.f32 %v292, 0.5
    %v961 = vmul.f32 %v293, 0.5
    %v962 = vmul.f32 %v290, 0.70710677
    %v963 = vmul.f32 %v291, 0.70710677
    %v964 = vmul.f32 %v292, 0.70710677
    %v965 = vmul.f32 %v293, 0.70710677
    %vm966 = vcmp.lt.f32.partialorder %v962, 0.0
    %vm967 = vcmp.lt.f32.partialorder %v963, 0.0
    %vm968 = vcmp.lt.f32.partialorder %v964, 0.0
    %vm969 = vcmp.lt.f32.partialorder %v965, 0.0
    %v970 = vsel %vm966, -1.0, 1.0
    %v971 = vsel %vm967, -1.0, 1.0
    %v972 = vsel %vm968, -1.0, 1.0
    %v973 = vsel %vm969, -1.0, 1.0
    %v974 = vand.u32 2147483647, %v962
    %v975 = vand.u32 2147483647, %v963
    %v976 = vand.u32 2147483647, %v964
    %v977 = vand.u32 2147483647, %v965
    %v978 = vmul.f32 %v974, 0.3275911
    %v979 = vmul.f32 %v975, 0.3275911
    %v980 = vmul.f32 %v976, 0.3275911
    %v981 = vmul.f32 %v977, 0.3275911
    %v982 = vadd.f32 %v978, 1.0
    %v983 = vadd.f32 %v979, 1.0
    %v984 = vadd.f32 %v980, 1.0
    %v985 = vadd.f32 %v981, 1.0
    %v986 = vrcp.pop %v982
    %v987 = vrcp.pop %v983
    %v988 = vrcp.pop %v984
    %v989 = vrcp.pop %v985
    %v990 = vmul.f32 %v982, %v986
    %v991 = vmul.f32 %v983, %v987
    %v992 = vmul.f32 %v984, %v988
    %v993 = vmul.f32 %v985, %v989
    %v994 = vsub.f32 2.0, %v990
    %v995 = vsub.f32 2.0, %v991
    %v996 = vsub.f32 2.0, %v992
    %v997 = vsub.f32 2.0, %v993
    %v998 = vmul.f32 %v986, %v994
    %v999 = vmul.f32 %v987, %v995
    %v1000 = vmul.f32 %v988, %v996
    %v1001 = vmul.f32 %v989, %v997
    %v1002 = vmul.f32 %v998, 1.0614054
    %v1003 = vmul.f32 %v999, 1.0614054
    %v1004 = vmul.f32 %v1000, 1.0614054
    %v1005 = vmul.f32 %v1001, 1.0614054
    %v1006 = vadd.f32 %v1002, -1.4531521
    %v1007 = vadd.f32 %v1003, -1.4531521
    %v1008 = vadd.f32 %v1004, -1.4531521
    %v1009 = vadd.f32 %v1005, -1.4531521
    %v1010 = vmul.f32 %v1006, %v998
    %v1011 = vmul.f32 %v1007, %v999
    %v1012 = vmul.f32 %v1008, %v1000
    %v1013 = vmul.f32 %v1009, %v1001
    %v1014 = vadd.f32 %v1010, 1.4214138
    %v1015 = vadd.f32 %v1011, 1.4214138
    %v1016 = vadd.f32 %v1012, 1.4214138
    %v1017 = vadd.f32 %v1013, 1.4214138
    %v1018 = vmul.f32 %v1014, %v998
    %v1019 = vmul.f32 %v1015, %v999
    %v1020 = vmul.f32 %v1016, %v1000
    %v1021 = vmul.f32 %v1017, %v1001
    %v1022 = vadd.f32 %v1018, -0.28449672
    %v1023 = vadd.f32 %v1019, -0.28449672
    %v1024 = vadd.f32 %v1020, -0.28449672
    %v1025 = vadd.f32 %v1021, -0.28449672
    %v1026 = vmul.f32 %v1022, %v998
    %v1027 = vmul.f32 %v1023, %v999
    %v1028 = vmul.f32 %v1024, %v1000
    %v1029 = vmul.f32 %v1025, %v1001
    %v1030 = vadd.f32 %v1026, 0.2548296
    %v1031 = vadd.f32 %v1027, 0.2548296
    %v1032 = vadd.f32 %v1028, 0.2548296
    %v1033 = vadd.f32 %v1029, 0.2548296
    %v1034 = vmul.f32 %v1030, %v998
    %v1035 = vmul.f32 %v1031, %v999
    %v1036 = vmul.f32 %v1032, %v1000
    %v1037 = vmul.f32 %v1033, %v1001
    %v1038 = vsub.f32 0.0, %v974
    %v1039 = vsub.f32 0.0, %v975
    %v1040 = vsub.f32 0.0, %v976
    %v1041 = vsub.f32 0.0, %v977
    %v1042 = vmul.f32 %v1038, %v974
    %v1043 = vmul.f32 %v1039, %v975
    %v1044 = vmul.f32 %v1040, %v976
    %v1045 = vmul.f32 %v1041, %v977
    %v1046 = vmul.f32 %v1042, 1.442695
    %v1047 = vpow.pop %v1046
    %v1048 = vmul.f32 %v1043, 1.442695
    %v1049 = vpow.pop %v1048
    %v1050 = vmul.f32 %v1044, 1.442695
    %v1051 = vpow.pop %v1050
    %v1052 = vmul.f32 %v1045, 1.442695
    %v1053 = vpow.pop %v1052
    %v1054 = vmul.f32 %v1034, %v1047
    %v1055 = vmul.f32 %v1035, %v1049
    %v1056 = vmul.f32 %v1036, %v1051
    %v1057 = vmul.f32 %v1037, %v1053
    %v1058 = vsub.f32 1.0, %v1054
    %v1059 = vsub.f32 1.0, %v1055
    %v1060 = vsub.f32 1.0, %v1056
    %v1061 = vsub.f32 1.0, %v1057
    %v1062 = vmul.f32 %v970, %v1058
    %v1063 = vmul.f32 %v971, %v1059
    %v1064 = vmul.f32 %v972, %v1060
    %v1065 = vmul.f32 %v973, %v1061
    %v1066 = vadd.f32 %v1062, 1.0
    %v1067 = vadd.f32 %v1063, 1.0
    %v1068 = vadd.f32 %v1064, 1.0
    %v1069 = vadd.f32 %v1065, 1.0
    %v1070 = vmul.f32 %v958, %v1066
    %v1071 = vmul.f32 %v959, %v1067
    %v1072 = vmul.f32 %v960, %v1068
    %v1073 = vmul.f32 %v961, %v1069
    %v1074 = vmul.f32 %v954, %v1070
    %v1075 = vmul.f32 %v955, %v1071
    %v1076 = vmul.f32 %v956, %v1072
    %v1077 = vmul.f32 %v957, %v1073
    %v1078 = vld [vmem:[%s14] sm:$0xf]
    %v1079 = vld [vmem:[%s15] sm:$0xf]
    %1081 = vset.pattern.permute.xlu0 0
    %1082 = vperm.xlu0 %1081, %v1078
    %v1083 = vpop.permute.xlu0 %1082
    %v1085 = vlaneseq
    %v1086 = vshrl.u32 %v1085, 7
    %v1087 = vsub.s32 0, %v1086
    %v1088 = vrot.slane %v1074, %v1087
    %v1089 = vlaneseq
    %v1090 = vshrl.u32 %v1089, 7
    %v1091 = vsub.s32 0, %v1090
    %v1092 = vrot.slane %v1075, %v1091
    %v1093 = vlaneseq
    %v1094 = vshrl.u32 %v1093, 7
    %v1095 = vsub.s32 0, %v1094
    %v1096 = vrot.slane %v1076, %v1095
    %v1097 = vlaneseq
    %v1098 = vshrl.u32 %v1097, 7
    %v1099 = vsub.s32 0, %v1098
    %v1100 = vrot.slane %v1077, %v1099
    %v1101 = vmul.f32 %v1083, %v1088
    %v1102 = vmul.f32 %v1083, %v1092
    %v1103 = vmul.f32 %v1083, %v1096
    %v1104 = vmul.f32 %v1083, %v1100
    %1105 = vset.pattern.permute.xlu0 1
    %1106 = vperm.xlu0 %1105, %v1078
    %v1107 = vpop.permute.xlu0 %1106
    %v1109 = vlaneseq
    %v1110 = vshrl.u32 %v1109, 7
    %v1111 = vsub.s32 1, %v1110
    %v1112 = vrot.slane %v1074, %v1111
    %v1113 = vlaneseq
    %v1114 = vshrl.u32 %v1113, 7
    %v1115 = vsub.s32 1, %v1114
    %v1116 = vrot.slane %v1075, %v1115
    %v1117 = vlaneseq
    %v1118 = vshrl.u32 %v1117, 7
    %v1119 = vsub.s32 1, %v1118
    %v1120 = vrot.slane %v1076, %v1119
    %v1121 = vlaneseq
    %v1122 = vshrl.u32 %v1121, 7
    %v1123 = vsub.s32 1, %v1122
    %v1124 = vrot.slane %v1077, %v1123
    %v1125 = vmul.f32 %v1107, %v1112
    %v1126 = vmul.f32 %v1107, %v1116
    %v1127 = vmul.f32 %v1107, %v1120
    %v1128 = vmul.f32 %v1107, %v1124
    %v1129 = vadd.f32 %v1101, %v1125
    %v1130 = vadd.f32 %v1102, %v1126
    %v1131 = vadd.f32 %v1103, %v1127
    %v1132 = vadd.f32 %v1104, %v1128
    %1133 = vset.pattern.permute.xlu0 2
    %1134 = vperm.xlu0 %1133, %v1078
    %v1135 = vpop.permute.xlu0 %1134
    %v1137 = vlaneseq
    %v1138 = vshrl.u32 %v1137, 7
    %v1139 = vsub.s32 2, %v1138
    %v1140 = vrot.slane %v1074, %v1139
    %v1141 = vlaneseq
    %v1142 = vshrl.u32 %v1141, 7
    %v1143 = vsub.s32 2, %v1142
    %v1144 = vrot.slane %v1075, %v1143
    %v1145 = vlaneseq
    %v1146 = vshrl.u32 %v1145, 7
    %v1147 = vsub.s32 2, %v1146
    %v1148 = vrot.slane %v1076, %v1147
    %v1149 = vlaneseq
    %v1150 = vshrl.u32 %v1149, 7
    %v1151 = vsub.s32 2, %v1150
    %v1152 = vrot.slane %v1077, %v1151
    %v1153 = vmul.f32 %v1135, %v1140
    %v1154 = vmul.f32 %v1135, %v1144
    %v1155 = vmul.f32 %v1135, %v1148
    %v1156 = vmul.f32 %v1135, %v1152
    %v1157 = vadd.f32 %v1129, %v1153
    %v1158 = vadd.f32 %v1130, %v1154
    %v1159 = vadd.f32 %v1131, %v1155
    %v1160 = vadd.f32 %v1132, %v1156
    %1161 = vset.pattern.permute.xlu0 3
    %1162 = vperm.xlu0 %1161, %v1078
    %v1163 = vpop.permute.xlu0 %1162
    %v1165 = vlaneseq
    %v1166 = vshrl.u32 %v1165, 7
    %v1167 = vsub.s32 3, %v1166
    %v1168 = vrot.slane %v1074, %v1167
    %v1169 = vlaneseq
    %v1170 = vshrl.u32 %v1169, 7
    %v1171 = vsub.s32 3, %v1170
    %v1172 = vrot.slane %v1075, %v1171
    %v1173 = vlaneseq
    %v1174 = vshrl.u32 %v1173, 7
    %v1175 = vsub.s32 3, %v1174
    %v1176 = vrot.slane %v1076, %v1175
    %v1177 = vlaneseq
    %v1178 = vshrl.u32 %v1177, 7
    %v1179 = vsub.s32 3, %v1178
    %v1180 = vrot.slane %v1077, %v1179
    %v1181 = vmul.f32 %v1163, %v1168
    %v1182 = vmul.f32 %v1163, %v1172
    %v1183 = vmul.f32 %v1163, %v1176
    %v1184 = vmul.f32 %v1163, %v1180
    %v1185 = vadd.f32 %v1157, %v1181
    %v1186 = vadd.f32 %v1158, %v1182
    %v1187 = vadd.f32 %v1159, %v1183
    %v1188 = vadd.f32 %v1160, %v1184
    %1189 = vset.pattern.permute.xlu0 4
    %1190 = vperm.xlu0 %1189, %v1078
    %v1191 = vpop.permute.xlu0 %1190
    %v1193 = vlaneseq
    %v1194 = vshrl.u32 %v1193, 7
    %v1195 = vsub.s32 4, %v1194
    %v1196 = vrot.slane %v1074, %v1195
    %v1197 = vlaneseq
    %v1198 = vshrl.u32 %v1197, 7
    %v1199 = vsub.s32 4, %v1198
    %v1200 = vrot.slane %v1075, %v1199
    %v1201 = vlaneseq
    %v1202 = vshrl.u32 %v1201, 7
    %v1203 = vsub.s32 4, %v1202
    %v1204 = vrot.slane %v1076, %v1203
    %v1205 = vlaneseq
    %v1206 = vshrl.u32 %v1205, 7
    %v1207 = vsub.s32 4, %v1206
    %v1208 = vrot.slane %v1077, %v1207
    %v1209 = vmul.f32 %v1191, %v1196
    %v1210 = vmul.f32 %v1191, %v1200
    %v1211 = vmul.f32 %v1191, %v1204
    %v1212 = vmul.f32 %v1191, %v1208
    %v1213 = vadd.f32 %v1185, %v1209
    %v1214 = vadd.f32 %v1186, %v1210
    %v1215 = vadd.f32 %v1187, %v1211
    %v1216 = vadd.f32 %v1188, %v1212
    %1217 = vset.pattern.permute.xlu0 5
    %1218 = vperm.xlu0 %1217, %v1078
    %v1219 = vpop.permute.xlu0 %1218
    %v1221 = vlaneseq
    %v1222 = vshrl.u32 %v1221, 7
    %v1223 = vsub.s32 5, %v1222
    %v1224 = vrot.slane %v1074, %v1223
    %v1225 = vlaneseq
    %v1226 = vshrl.u32 %v1225, 7
    %v1227 = vsub.s32 5, %v1226
    %v1228 = vrot.slane %v1075, %v1227
    %v1229 = vlaneseq
    %v1230 = vshrl.u32 %v1229, 7
    %v1231 = vsub.s32 5, %v1230
    %v1232 = vrot.slane %v1076, %v1231
    %v1233 = vlaneseq
    %v1234 = vshrl.u32 %v1233, 7
    %v1235 = vsub.s32 5, %v1234
    %v1236 = vrot.slane %v1077, %v1235
    %v1237 = vmul.f32 %v1219, %v1224
    %v1238 = vmul.f32 %v1219, %v1228
    %v1239 = vmul.f32 %v1219, %v1232
    %v1240 = vmul.f32 %v1219, %v1236
    %v1241 = vadd.f32 %v1213, %v1237
    %v1242 = vadd.f32 %v1214, %v1238
    %v1243 = vadd.f32 %v1215, %v1239
    %v1244 = vadd.f32 %v1216, %v1240
    %1245 = vset.pattern.permute.xlu0 6
    %1246 = vperm.xlu0 %1245, %v1078
    %v1247 = vpop.permute.xlu0 %1246
    %v1249 = vlaneseq
    %v1250 = vshrl.u32 %v1249, 7
    %v1251 = vsub.s32 6, %v1250
    %v1252 = vrot.slane %v1074, %v1251
    %v1253 = vlaneseq
    %v1254 = vshrl.u32 %v1253, 7
    %v1255 = vsub.s32 6, %v1254
    %v1256 = vrot.slane %v1075, %v1255
    %v1257 = vlaneseq
    %v1258 = vshrl.u32 %v1257, 7
    %v1259 = vsub.s32 6, %v1258
    %v1260 = vrot.slane %v1076, %v1259
    %v1261 = vlaneseq
    %v1262 = vshrl.u32 %v1261, 7
    %v1263 = vsub.s32 6, %v1262
    %v1264 = vrot.slane %v1077, %v1263
    %v1265 = vmul.f32 %v1247, %v1252
    %v1266 = vmul.f32 %v1247, %v1256
    %v1267 = vmul.f32 %v1247, %v1260
    %v1268 = vmul.f32 %v1247, %v1264
    %v1269 = vadd.f32 %v1241, %v1265
    %v1270 = vadd.f32 %v1242, %v1266
    %v1271 = vadd.f32 %v1243, %v1267
    %v1272 = vadd.f32 %v1244, %v1268
    %1273 = vset.pattern.permute.xlu0 7
    %1274 = vperm.xlu0 %1273, %v1078
    %v1275 = vpop.permute.xlu0 %1274
    %v1277 = vlaneseq
    %v1278 = vshrl.u32 %v1277, 7
    %v1279 = vsub.s32 7, %v1278
    %v1280 = vrot.slane %v1074, %v1279
    %v1281 = vlaneseq
    %v1282 = vshrl.u32 %v1281, 7
    %v1283 = vsub.s32 7, %v1282
    %v1284 = vrot.slane %v1075, %v1283
    %v1285 = vlaneseq
    %v1286 = vshrl.u32 %v1285, 7
    %v1287 = vsub.s32 7, %v1286
    %v1288 = vrot.slane %v1076, %v1287
    %v1289 = vlaneseq
    %v1290 = vshrl.u32 %v1289, 7
    %v1291 = vsub.s32 7, %v1290
    %v1292 = vrot.slane %v1077, %v1291
    %v1293 = vmul.f32 %v1275, %v1280
    %v1294 = vmul.f32 %v1275, %v1284
    %v1295 = vmul.f32 %v1275, %v1288
    %v1296 = vmul.f32 %v1275, %v1292
    %v1297 = vadd.f32 %v1269, %v1293
    %v1298 = vadd.f32 %v1270, %v1294
    %v1299 = vadd.f32 %v1271, %v1295
    %v1300 = vadd.f32 %v1272, %v1296
    %1302 = vset.pattern.permute.xlu0 0
    %1303 = vperm.xlu0 %1302, %v1079
    %v1304 = vpop.permute.xlu0 %1303
    %v1306 = vadd.f32 %v1297, %v1304
    %v1307 = vadd.f32 %v1298, %v1304
    %v1308 = vadd.f32 %v1299, %v1304
    %v1309 = vadd.f32 %v1300, %v1304
    %v1310 = vadd.f32 %v1306, %v54
    %v1311 = vadd.f32 %v1307, %v58
    %v1312 = vadd.f32 %v1308, %v56
    %v1313 = vadd.f32 %v1309, %v61
    %v1316 = vcombine.low %v1310, %v1311
    %1318 = vst [vmem:[#allocation2] sm:$0xff] %v1316
    %v1321 = vcombine.low %v1312, %v1313
    %s1323 = scalar_lea.vmem [#allocation2], 8
    %1324 = vst [vmem:[%s1323] sm:$0xff] %v1321
    // Predicated region
    $region66: #{tpu_custom_call.1} parent=1 // pred_check
      _
    $region67: #{tpu_custom_call.1} parent=1 // pred_check_branch
      %1326 = sbr.rel (0) target = $region69
    $region68: #{tpu_custom_call.1} parent=1 // pred_region
      %s1328 = ssub.s32 256, 256
      %1329 = vsyncadd [#allocation3], %s1328
      %s1330 = sshll.u32 [#allocation2], 4
      %s1331 = int_to_ptr.vmem [resolvable:$true] %s1330
      %1336 = dma.vmem_to_hbm [thread:$0]  %s1331, 256, %s16, [#allocation3], 128, 128, 8
    $region69: #{tpu_custom_call.1} parent=1 // pred_fallthru
      _
    // Predicated region
    $region70: #{tpu_custom_call.1} parent=1 // pred_check
      _
    $region71: #{tpu_custom_call.1} parent=1 // pred_check_branch
      %1338 = sbr.rel (0) target = $region73
    $region72: #{tpu_custom_call.1} parent=1 // pred_region
      %1339 = dma.done [#allocation3], 256
    $region73: #{tpu_custom_call.1} parent=1 // pred_fallthru
      _
    %1340 = vsyncpa [#allocation3], 1

</llo_original>
